<compile_context>
chip_gen: v6e
topology: v6e:2x2x1
jax: 0.10.0
libtpu: 0.0.40
codegen_flags: <defaults>
</compile_context>

<pallas_src>
import functools

import jax
import jax.numpy as jnp
from jax.experimental import pallas as pl
from jax.experimental.pallas import tpu as pltpu

_MIB = 1024 * 1024


def _round_up(x, m):
    return ((x + m - 1) // m) * m


def _cdiv(a, b):
    return (a + b - 1) // b


@functools.lru_cache(maxsize=None)
def _hw_params():
    """Per-generation (block_bytes_target, vmem_cap).  Conservative default."""
    kind = ""
    try:
        kind = jax.devices()[0].device_kind.lower()
    except Exception:  # pragma: no cover - be bulletproof at trace time
        pass
    if ("v5" in kind) or ("v6" in kind):
        # 128 MiB-VMEM parts: bigger blocks push closer to the HBM roofline
        # (~86% at 4 MiB tiles -> ~90%+ with larger tiles measured on v6e).
        return 16 * _MIB, 96 * _MIB
    # v7x (64 MiB VMEM/TC, 3.2 TB/s HBM) and unknown chips: ~8 MiB blocks keep
    # the ~0.35 us per-grid-step overhead at ~5% of the step while
    # 2 inputs x 2 buffers x 8 MiB + output/headroom still fits VMEM.
    return 8 * _MIB, 56 * _MIB


def _choose_tiles(n, h, itemsize, block_bytes_target):
    """Byte-sized tiling: pick (tile_n, tile_h) so one input block ~ target."""
    sub = 16 if itemsize == 2 else 8  # sublane packing (bf16 packs 2 rows)

    # Reduction (hidden) axis: tile_h must be == h (full dim) or a multiple of
    # 128 that divides h exactly, so no padded garbage enters the accumulator.
    tile_h = h
    if h % 128 == 0 and h * sub * itemsize > block_bytes_target:
        fitting = [
            c
            for c in range(128, h, 128)
            if h % c == 0 and c * sub * itemsize <= block_bytes_target
        ]
        if fitting:
            tile_h = max(fitting)
    # (If h is enormous and not a multiple of 128 we keep tile_h == h; the
    #  vmem request below is capped, so truly pathological h may not fit.)

    # Row axis: fill the byte budget, then balance the block count and keep it
    # even so the two v7x TensorCores split the "parallel" row axis evenly
    # (on single-TC chips this costs at most one extra ~0.35 us grid step).
    rows = block_bytes_target // max(1, tile_h * itemsize)
    rows = max(sub, (rows // sub) * sub)
    num_row_blocks = _round_up(_cdiv(n, rows), 2)
    tile_n = _round_up(_cdiv(n, num_row_blocks), sub)
    tile_n = max(sub, min(tile_n, _round_up(n, sub)))
    return tile_n, tile_h


def _rowdot_kernel_single(f_ref, s_ref, o_ref):
    # Full hidden dim in one block: direct store, no scratch, no init/finalize.
    # f32 math: mandatory on v5e (no bf16 VALU), free elsewhere (mem-bound).
    f = f_ref[...].astype(jnp.float32)
    s = s_ref[...].astype(jnp.float32)
    o_ref[...] = jnp.sum(f * s, axis=-1, keepdims=True).astype(o_ref.dtype)


def _rowdot_kernel_acc(f_ref, s_ref, o_ref, acc_ref):
    k = pl.program_id(1)  # reduction (hidden) axis — last grid axis

    @pl.when(k == 0)
    def _init():
        acc_ref[...] = jnp.zeros_like(acc_ref)

    f = f_ref[...].astype(jnp.float32)
    s = s_ref[...].astype(jnp.float32)
    acc_ref[...] += jnp.sum(f * s, axis=-1, keepdims=True)

    @pl.when(k == pl.num_programs(1) - 1)
    def _store():
        o_ref[...] = acc_ref[...].astype(o_ref.dtype)


def _rowdot_pallas(features, summary, *, block_bytes_target=None):
    n, h = features.shape
    itemsize = jnp.dtype(features.dtype).itemsize
    hw_block_target, vmem_cap = _hw_params()
    if block_bytes_target is None:
        block_bytes_target = hw_block_target

    tile_n, tile_h = _choose_tiles(n, h, itemsize, block_bytes_target)
    num_row_blocks = _cdiv(n, tile_n)
    num_k = h // tile_h

    # 2 inputs x 2 pipeline buffers x block + narrow output/accumulator columns
    # + headroom for compiler scratch; capped per-generation.
    block_bytes = tile_n * tile_h * itemsize
    needed = 4 * block_bytes + 8 * tile_n * 4 + 4 * _MIB
    vmem_bytes = int(min(max(needed, 16 * _MIB), vmem_cap))

    out_shape = jax.ShapeDtypeStruct((n, 1), features.dtype)

    if num_k == 1:
        grid_spec = pltpu.PrefetchScalarGridSpec(
            num_scalar_prefetch=0,
            grid=(num_row_blocks,),
            in_specs=[
                pl.BlockSpec((tile_n, tile_h), lambda i: (i, 0)),
                pl.BlockSpec((tile_n, tile_h), lambda i: (i, 0)),
            ],
            out_specs=pl.BlockSpec((tile_n, 1), lambda i: (i, 0)),
        )
        kernel = _rowdot_kernel_single
        dim_sem = ("parallel",)
    else:
        grid_spec = pltpu.PrefetchScalarGridSpec(
            num_scalar_prefetch=0,
            grid=(num_row_blocks, num_k),
            in_specs=[
                pl.BlockSpec((tile_n, tile_h), lambda i, k: (i, k)),
                pl.BlockSpec((tile_n, tile_h), lambda i, k: (i, k)),
            ],
            out_specs=pl.BlockSpec((tile_n, 1), lambda i, k: (i, 0)),
            scratch_shapes=[pltpu.VMEM((tile_n, 1), jnp.float32)],
        )
        kernel = _rowdot_kernel_acc
        dim_sem = ("parallel", "arbitrary")

    return pl.pallas_call(
        kernel,
        out_shape=out_shape,
        grid_spec=grid_spec,
        compiler_params=pltpu.CompilerParams(
            dimension_semantics=dim_sem,
            vmem_limit_bytes=vmem_bytes,
        ),
    )(features, summary)


def discriminator_k(features, summary, *, block_bytes_target=None,
                    min_pallas_bytes=8 * _MIB):
    """DiscriminatorK.forward: per-row dot product, returned as (n, 1, 1)."""
    n, h = features.shape
    assert summary.shape == (n, h)
    itemsize = jnp.dtype(features.dtype).itemsize

    # Bytes-based routing: with fewer than ~2 pipeline-worthy blocks of HBM
    # traffic (or a lane-wasting h < 128), the fixed pallas_call overhead
    # dominates and XLA's fused mul+reduce is faster.
    if (2 * n * h * itemsize) < min_pallas_bytes or h < 128:
        out = jnp.einsum(
            "nh,nh->n",
            features.astype(jnp.float32),
            summary.astype(jnp.float32),
        ).astype(features.dtype)
        return out.reshape(n, 1, 1)

    return _rowdot_pallas(
        features, summary, block_bytes_target=block_bytes_target
    ).reshape(n, 1, 1)


if __name__ == "__main__":
    key = jax.random.PRNGKey(0)

    def reference(f, s):
        return jnp.einsum(
            "nh,nh->n", f.astype(jnp.float32), s.astype(jnp.float32)
        ).reshape(f.shape[0], 1, 1)

    # 1) Tiny toy shape (module-scale) -> bytes threshold routes to XLA path.
    kf, ks, key = jax.random.split(key, 3)
    n, h = 8, 32
    f = jax.random.normal(kf, (n, h), dtype=jnp.float32)
    s = jax.random.normal(ks, (n, h), dtype=jnp.float32)
    out = jax.block_until_ready(discriminator_k(f, s))
    assert out.shape == (n, 1, 1)
    assert jnp.allclose(out, reference(f, s), atol=1e-4, rtol=1e-5)

    # 2) Modest shape with the default threshold -> still the XLA fast path
    #    (only ~2 MB of HBM traffic; verifies the bytes-based routing).
    kf, ks, key = jax.random.split(key, 3)
    n, h = 1024, 256
    f = jax.random.normal(kf, (n, h), dtype=jnp.float32)
    s = jax.random.normal(ks, (n, h), dtype=jnp.float32)
    out = jax.block_until_ready(discriminator_k(f, s))
    assert out.shape == (n, 1, 1)
    assert jnp.allclose(out, reference(f, s), atol=1e-3, rtol=1e-5)

    # 3) Force the Pallas single-k fast path (tile_h == h): balanced, even row
    #    grid with a ragged padded trailing block whose extra rows are dropped.
    kf, ks, key = jax.random.split(key, 3)
    n, h = 1000, 256
    f = jax.random.normal(kf, (n, h), dtype=jnp.float32)
    s = jax.random.normal(ks, (n, h), dtype=jnp.float32)
    out = jax.block_until_ready(discriminator_k(f, s, min_pallas_bytes=0))
    assert out.shape == (n, 1, 1)
    assert jnp.allclose(out, reference(f, s), atol=1e-3, rtol=1e-5)

    # 4) Force the k-tiled accumulator path (both grid axes) with a tiny block
    #    budget so the test stays small.
    kf, ks, key = jax.random.split(key, 3)
    n, h = 520, 1024
    f = jax.random.normal(kf, (n, h), dtype=jnp.float32)
    s = jax.random.normal(ks, (n, h), dtype=jnp.float32)
    out = jax.block_until_ready(
        discriminator_k(f, s, block_bytes_target=16 * 1024, min_pallas_bytes=0)
    )
    assert out.shape == (n, 1, 1)
    assert jnp.allclose(out, reference(f, s), atol=1e-3, rtol=1e-5)

    print("KERNEL_OK")
</pallas_src>

<mosaic_0001>
module attributes {stable_mosaic.version = 11 : i64} {
  func.func @_rowdot_kernel_single(%arg0: i32, %arg1: memref<504x256xf32, #tpu.memory_space<vmem>>, %arg2: memref<504x256xf32, #tpu.memory_space<vmem>>, %arg3: memref<504x1xf32, #tpu.memory_space<vmem>>) attributes {dimension_semantics = [#tpu.dimension_semantics<parallel>], iteration_bounds = array<i64: 2>, scalar_prefetch = 0 : i64, scratch_operands = 0 : i64, tpu.core_type = #tpu.core_type<tc>, window_params = [{transform_indices = @transform_0, window_bounds = array<i64: 504, 256>}, {transform_indices = @transform_1, window_bounds = array<i64: 504, 256>}, {transform_indices = @transform_2, window_bounds = array<i64: 504, 1>}]} {
    %c0 = arith.constant 0 : index
    %c0_0 = arith.constant 0 : index
    %0 = vector.load %arg1[%c0, %c0_0] : memref<504x256xf32, #tpu.memory_space<vmem>>, vector<504x256xf32>
    %c0_1 = arith.constant 0 : index
    %c0_2 = arith.constant 0 : index
    %1 = vector.load %arg2[%c0_1, %c0_2] : memref<504x256xf32, #tpu.memory_space<vmem>>, vector<504x256xf32>
    %2 = arith.mulf %0, %1 : vector<504x256xf32>
    %cst = arith.constant dense<0.000000e+00> : vector<504xf32>
    %3 = vector.multi_reduction <add>, %2, %cst [1] : vector<504x256xf32> to vector<504xf32>
    %4 = vector.shape_cast %3 : vector<504xf32> to vector<504x1xf32>
    %c0_3 = arith.constant 0 : index
    %c0_4 = arith.constant 0 : index
    %5 = vector.load %arg3[%c0_3, %c0_4] : memref<504x1xf32, #tpu.memory_space<vmem>>, vector<504x1xf32>
    tpu.vector_store %arg3[%c0_3, %c0_4], %4 {strides = array<i32>} : memref<504x1xf32, #tpu.memory_space<vmem>>, vector<504x1xf32>,
    return
  }
  func.func @transform_0(%arg0: i32) -> (i32, i32) {
    %c0_i32 = arith.constant 0 : i32
    %c0_i32_0 = arith.constant 0 : i32
    return %arg0, %c0_i32 : i32, i32
  }
  func.func @transform_1(%arg0: i32) -> (i32, i32) {
    %c0_i32 = arith.constant 0 : i32
    %c0_i32_0 = arith.constant 0 : i32
    return %arg0, %c0_i32 : i32, i32
  }
  func.func @transform_2(%arg0: i32) -> (i32, i32) {
    %c0_i32 = arith.constant 0 : i32
    %c0_i32_0 = arith.constant 0 : i32
    return %arg0, %c0_i32 : i32, i32
  }
}

</mosaic_0001>

<llo_original>
// kernel: tpu_custom_call.1
$region0: #{tpu_custom_call.1}
  #allocation0 [shape = 'u32[]', space=smem, size = 0x4, offset = 0x4, fixed_abs, tag = 'smem constant byte address 0x4 - core index']
  #allocation1 [shape = 'u32[144,128]{1,0:T(1,128)}', space=vmem, size = 0x12000, scoped, tag = 'internal scratch']
  %s0 = inlined_call_operand.hbm [shape: f32[1000,256], index: 0, kind: input, shape index: {}]
  %s1 = inlined_call_operand.hbm [shape: f32[1000,256], index: 1, kind: input, shape index: {}]
  %s2 = inlined_call_operand.vmem [shape: f32[1000,1], index: 2, kind: output, shape index: {}]
  %s3 = sld [smem:[#allocation0]]
  $region97: #{tpu_custom_call.1} parent=0
    _
  %s5 = ssub.s32 1, %s3
  %s6 = scalar_select 0, %s5, %s3
  $region1: #{tpu_custom_call.1} parent=0
    #allocation2 [shape = 'u8[1032192]{0}', space=vmem, size = 0xfc000, scoped, tag = 'input window, operand 0']
    #allocation3 [shape = 's32[2]{0}', space=sflag, size = 0x8, scoped, tag = 'scoped memory for tpu_custom_call.1']
    #allocation4 [shape = 'u8[1032192]{0}', space=vmem, size = 0xfc000, scoped, tag = 'input window, operand 1']
    #allocation5 [shape = 's32[2]{0}', space=sflag, size = 0x8, scoped, tag = 'scoped memory for tpu_custom_call.1']
    #allocation6 [shape = 'u8[516096]{0}', space=vmem, size = 0x7e000, scoped, tag = 'output window, operand 0']
    %7 = vsyncpa [#allocation3], 0
    %s8 = scalar_lea.sflag [#allocation3], 1
    %9 = vsyncpa %s8, 0
    %10 = vsyncpa [#allocation5], 0
    %s11 = scalar_lea.sflag [#allocation5], 1
    %12 = vsyncpa %s11, 0
    loop: start=0, step=1, limit=4
    $region2: #{tpu_custom_call.1} parent=1 // loop_pre_header
      _
    $region3: #{tpu_custom_call.1} parent=1 // loop_header
      %s14 = sphi 0, %s18
      %p15 = scmp.ge.s32.totalorder %s14, 4
      %s24 = sphi 0, %s26
      %s27 = sphi 0, %s24
      %s28 = sphi 0, %s27
      %s44 = sphi 0, %s28
      %s50 = sphi 0, %s52
      %s53 = sphi 0, %s50
      %s54 = sphi 0, %s53
      %s70 = sphi 0, %s54
      %s76 = sphi 0, %s78
      %s79 = sphi 0, %s76
      %s80 = sphi 0, %s79
      %s96 = sphi 0, %s80
    $region4: #{tpu_custom_call.1} parent=1 // loop_header_branch
      %17 = sbr.rel (%p15) target = $region8
    $region5: #{tpu_custom_call.1} parent=1 // loop_body
      %s19 = ssub.s32 %s14, 1
      %s20 = ssub.s32 %s14, 2
      %s21 = sadd.s32 %s14, 1
      %s22 = ssub.s32 %s14, %s21
      %p23 = scmp.eq.s32.totalorder %s22, 0
      %s25 = sadd.s32 %s24, 1
      %s26 = scalar_select %p23, %s24, %s25
      %p29 = pneg %p23
      %p30 = scmp.eq.s32.totalorder %s14, 1
      %p31 = por %p29, %p30
      %p32 = scmp.ne.s32.totalorder %s24, %s27
      %p33 = scmp.eq.s32.totalorder %s14, 0
      %p34 = por %p32, %p33
      %p35 = scmp.ne.s32.totalorder %s24, %s27
      %p36 = scmp.eq.s32.totalorder %s19, 1
      %p37 = por %p35, %p36
      %p38 = scmp.ne.s32.totalorder %s27, %s28
      %p39 = scmp.eq.s32.totalorder %s19, 0
      %p40 = por %p38, %p39
      %p41 = scmp.ne.s32.totalorder %s27, %s28
      %p42 = scmp.eq.s32.totalorder %s20, 1
      %p43 = por %p41, %p42
      %p45 = scmp.ne.s32.totalorder %s28, %s44
      %p46 = scmp.eq.s32.totalorder %s20, 0
      %p47 = por %p45, %p46
      %s48 = ssub.s32 %s14, %s21
      %p49 = scmp.eq.s32.totalorder %s48, 0
      %s51 = sadd.s32 %s50, 1
      %s52 = scalar_select %p49, %s50, %s51
      %p55 = pneg %p49
      %p56 = scmp.eq.s32.totalorder %s14, 1
      %p57 = por %p55, %p56
      %p58 = scmp.ne.s32.totalorder %s50, %s53
      %p59 = scmp.eq.s32.totalorder %s14, 0
      %p60 = por %p58, %p59
      %p61 = scmp.ne.s32.totalorder %s50, %s53
      %p62 = scmp.eq.s32.totalorder %s19, 1
      %p63 = por %p61, %p62
      %p64 = scmp.ne.s32.totalorder %s53, %s54
      %p65 = scmp.eq.s32.totalorder %s19, 0
      %p66 = por %p64, %p65
      %p67 = scmp.ne.s32.totalorder %s53, %s54
      %p68 = scmp.eq.s32.totalorder %s20, 1
      %p69 = por %p67, %p68
      %p71 = scmp.ne.s32.totalorder %s54, %s70
      %p72 = scmp.eq.s32.totalorder %s20, 0
      %p73 = por %p71, %p72
      %s74 = ssub.s32 %s14, %s21
      %p75 = scmp.eq.s32.totalorder %s74, 0
      %s77 = sadd.s32 %s76, 1
      %s78 = scalar_select %p75, %s76, %s77
      %p81 = pneg %p75
      %p82 = scmp.eq.s32.totalorder %s14, 1
      %p83 = por %p81, %p82
      %p84 = scmp.ne.s32.totalorder %s76, %s79
      %p85 = scmp.eq.s32.totalorder %s14, 0
      %p86 = por %p84, %p85
      %p87 = scmp.ne.s32.totalorder %s76, %s79
      %p88 = scmp.eq.s32.totalorder %s19, 1
      %p89 = por %p87, %p88
      %p90 = scmp.ne.s32.totalorder %s79, %s80
      %p91 = scmp.eq.s32.totalorder %s19, 0
      %p92 = por %p90, %p91
      %p93 = scmp.ne.s32.totalorder %s79, %s80
      %p94 = scmp.eq.s32.totalorder %s20, 1
      %p95 = por %p93, %p94
      %p97 = scmp.ne.s32.totalorder %s80, %s96
      %p98 = scmp.eq.s32.totalorder %s20, 0
      %p99 = por %p97, %p98
      %p100 = scmp.le.s32.totalorder 1, %s14
      %p101 = scmp.lt.s32.totalorder %s14, 3
      %p102 = pnand %p100, %p101
      %p103 = pneg %p102
      // Predicated region
      $region9: #{tpu_custom_call.1} parent=5 // pred_check
        _
      $region10: #{tpu_custom_call.1} parent=5 // pred_check_branch
        %105 = sbr.rel (%p102) target = $region12
      $region11: #{tpu_custom_call.1} parent=5 // pred_region
        %s106 = ssub.s32 %s14, 1
      $region12: #{tpu_custom_call.1} parent=5 // pred_fallthru
        _
      %p107 = scmp.lt.s32.totalorder %s14, 2
      // Predicated region
      $region13: #{tpu_custom_call.1} parent=5 // pred_check
        %p108 = pneg %p107
      $region14: #{tpu_custom_call.1} parent=5 // pred_check_branch
        %110 = sbr.rel (%p108) target = $region16
      $region15: #{tpu_custom_call.1} parent=5 // pred_region
        // Predicated region
        $region17: #{tpu_custom_call.1} parent=15 // pred_check
          %p111 = pneg %p34
        $region18: #{tpu_custom_call.1} parent=15 // pred_check_branch
          %113 = sbr.rel (%p111) target = $region20
        $region19: #{tpu_custom_call.1} parent=15 // pred_region
          %s114 = sand.u32 %s24, 1
          %s115 = scalar_lea.sflag [#allocation3], %s114
          %s116 = sand.u32 %s24, 1
          %s117 = smul.addr %s116, 1008
          %s118 = scalar_lea.vmem [#allocation2], %s117
          %s119 = smul.u32 63, %s14
          %s120 = ssub.s32 125, %s119
          %p121 = scmp.lt.s32.totalorder %s120, 63
          %s122 = scalar_select %p121, %s120, 63
          %s123 = smul.u32 128, %s122
          %s124 = smul.u32 %s123, 2
          %s126 = ssub.s32 16128, %s124
          %127 = vsyncadd %s115, %s126
          %p128 = scmp.ne.s32.totalorder 0, %s124
          %s129 = smul.addr %s119, 2
          %s130 = smul.addr %s129, 128
          %s131 = scalar_lea.hbm %s0, %s130
          %s132 = smul.u32 16, %s122
          %s133 = sshll.u32 %s118, 4
          %s134 = int_to_ptr.vmem [resolvable:$true] %s133
          %s135 = sshll.u32 %s132, 4
          %139 = dma.hbm_to_vmem [thread:$0]  (%p128), %s131, %s135, %s134, %s115, 256, 256, 16
        $region20: #{tpu_custom_call.1} parent=15 // pred_fallthru
          _
        // Predicated region
        $region21: #{tpu_custom_call.1} parent=15 // pred_check
          %p140 = pneg %p60
        $region22: #{tpu_custom_call.1} parent=15 // pred_check_branch
          %142 = sbr.rel (%p140) target = $region24
        $region23: #{tpu_custom_call.1} parent=15 // pred_region
          %s143 = sand.u32 %s50, 1
          %s144 = scalar_lea.sflag [#allocation5], %s143
          %s145 = sand.u32 %s50, 1
          %s146 = smul.addr %s145, 1008
          %s147 = scalar_lea.vmem [#allocation4], %s146
          %s148 = smul.u32 63, %s14
          %s149 = ssub.s32 125, %s148
          %p150 = scmp.lt.s32.totalorder %s149, 63
          %s151 = scalar_select %p150, %s149, 63
          %s152 = smul.u32 128, %s151
          %s153 = smul.u32 %s152, 2
          %s155 = ssub.s32 16128, %s153
          %156 = vsyncadd %s144, %s155
          %p157 = scmp.ne.s32.totalorder 0, %s153
          %s158 = smul.addr %s148, 2
          %s159 = smul.addr %s158, 128
          %s160 = scalar_lea.hbm %s1, %s159
          %s161 = smul.u32 16, %s151
          %s162 = sshll.u32 %s147, 4
          %s163 = int_to_ptr.vmem [resolvable:$true] %s162
          %s164 = sshll.u32 %s161, 4
          %168 = dma.hbm_to_vmem [thread:$0]  (%p157), %s160, %s164, %s163, %s144, 256, 256, 16
        $region24: #{tpu_custom_call.1} parent=15 // pred_fallthru
          _
      $region16: #{tpu_custom_call.1} parent=5 // pred_fallthru
        _
      %p169 = scmp.le.s32.totalorder 1, %s14
      %p170 = scmp.lt.s32.totalorder %s14, 3
      %p171 = pnand %p169, %p170
      %p172 = pneg %p171
      // Predicated region
      $region25: #{tpu_custom_call.1} parent=5 // pred_check
        _
      $region26: #{tpu_custom_call.1} parent=5 // pred_check_branch
        %174 = sbr.rel (%p171) target = $region28
      $region27: #{tpu_custom_call.1} parent=5 // pred_region
        %s175 = ssub.s32 %s14, 1
        %s176 = sand.u32 %s27, 1
        %s177 = scalar_lea.sflag [#allocation3], %s176
        %s178 = sand.u32 %s27, 1
        %s179 = smul.addr %s178, 1008
        %s180 = scalar_lea.vmem [#allocation2], %s179
        // Predicated region
        $region29: #{tpu_custom_call.1} parent=27 // pred_check
          %p181 = pneg %p40
        $region30: #{tpu_custom_call.1} parent=27 // pred_check_branch
          %183 = sbr.rel (%p181) target = $region32
        $region31: #{tpu_custom_call.1} parent=27 // pred_region
          %184 = dma.done %s177, 16128
        $region32: #{tpu_custom_call.1} parent=27 // pred_fallthru
          _
        %s185 = sand.u32 %s53, 1
        %s186 = scalar_lea.sflag [#allocation5], %s185
        %s187 = sand.u32 %s53, 1
        %s188 = smul.addr %s187, 1008
        %s189 = scalar_lea.vmem [#allocation4], %s188
        // Predicated region
        $region33: #{tpu_custom_call.1} parent=27 // pred_check
          %p190 = pneg %p66
        $region34: #{tpu_custom_call.1} parent=27 // pred_check_branch
          %192 = sbr.rel (%p190) target = $region36
        $region35: #{tpu_custom_call.1} parent=27 // pred_region
          %193 = dma.done %s186, 16128
        $region36: #{tpu_custom_call.1} parent=27 // pred_fallthru
          _
        %s194 = sand.u32 %s27, 1
        %s195 = scalar_lea.sflag [#allocation3], %s194
        %s196 = sand.u32 %s27, 1
        %s197 = smul.addr %s196, 1008
        %s198 = scalar_lea.vmem [#allocation2], %s197
        %p199 = pneg %p40
        %p200 = pneg %p37
        %s201 = sand.u32 %s53, 1
        %s202 = scalar_lea.sflag [#allocation5], %s201
        %s203 = sand.u32 %s53, 1
        %s204 = smul.addr %s203, 1008
        %s205 = scalar_lea.vmem [#allocation4], %s204
        %p206 = pneg %p66
        %p207 = pneg %p63
        %p208 = pneg %p92
        %p209 = pneg %p89
        %s210 = sand.u32 %s79, 1
        %s211 = sand.u32 %s79, 1
        %s212 = smul.addr %s211, 504
        %s213 = scalar_lea.vmem [#allocation6], %s212
        %s214 = smul.u32 63, %s19
        %s215 = ssub.s32 125, %s214
        %p216 = scmp.lt.s32.totalorder %s215, 63
        %s217 = scalar_select %p216, %s215, 63
        %s218 = smul.u32 128, %s217
        %s219 = smul.u32 %s218, 2
        %s220 = smul.u32 63, %s19
        %s221 = ssub.s32 125, %s220
        %p222 = scmp.lt.s32.totalorder %s221, 63
        %s223 = scalar_select %p222, %s221, 63
        %s224 = smul.u32 128, %s223
        %s225 = smul.u32 %s224, 2
        %s226 = smul.u32 63, %s19
        %s227 = ssub.s32 125, %s226
        %p228 = scmp.lt.s32.totalorder %s227, 63
        %s229 = scalar_select %p228, %s227, 63
        %s230 = smul.u32 128, %s229
        %v231 = vld [vmem:[%s180] sm:$0xff]
        %v232 = vld [vmem:[%s180 + $0x8] sm:$0xff]
        %v233 = vld [vmem:[%s180 + $0x10] sm:$0xff]
        %v234 = vld [vmem:[%s180 + $0x18] sm:$0xff]
        %v235 = vld [vmem:[%s180 + $0x20] sm:$0xff]
        %v236 = vld [vmem:[%s180 + $0x28] sm:$0xff]
        %v237 = vld [vmem:[%s180 + $0x30] sm:$0xff]
        %v238 = vld [vmem:[%s180 + $0x38] sm:$0xff]
        %v239 = vld [vmem:[%s180 + $0x40] sm:$0xff]
        %v240 = vld [vmem:[%s180 + $0x48] sm:$0xff]
        %v241 = vld [vmem:[%s180 + $0x50] sm:$0xff]
        %v242 = vld [vmem:[%s180 + $0x58] sm:$0xff]
        %v243 = vld [vmem:[%s180 + $0x60] sm:$0xff]
        %v244 = vld [vmem:[%s180 + $0x68] sm:$0xff]
        %v245 = vld [vmem:[%s180 + $0x70] sm:$0xff]
        %v246 = vld [vmem:[%s180 + $0x78] sm:$0xff]
        %v247 = vld [vmem:[%s180 + $0x80] sm:$0xff]
        %v248 = vld [vmem:[%s180 + $0x88] sm:$0xff]
        %v249 = vld [vmem:[%s180 + $0x90] sm:$0xff]
        %v250 = vld [vmem:[%s180 + $0x98] sm:$0xff]
        %v251 = vld [vmem:[%s180 + $0xa0] sm:$0xff]
        %v252 = vld [vmem:[%s180 + $0xa8] sm:$0xff]
        %v253 = vld [vmem:[%s180 + $0xb0] sm:$0xff]
        %v254 = vld [vmem:[%s180 + $0xb8] sm:$0xff]
        %v255 = vld [vmem:[%s180 + $0xc0] sm:$0xff]
        %v256 = vld [vmem:[%s180 + $0xc8] sm:$0xff]
        %v257 = vld [vmem:[%s180 + $0xd0] sm:$0xff]
        %v258 = vld [vmem:[%s180 + $0xd8] sm:$0xff]
        %v259 = vld [vmem:[%s180 + $0xe0] sm:$0xff]
        %v260 = vld [vmem:[%s180 + $0xe8] sm:$0xff]
        %v261 = vld [vmem:[%s180 + $0xf0] sm:$0xff]
        %v262 = vld [vmem:[%s180 + $0xf8] sm:$0xff]
        %v263 = vld [vmem:[%s180 + $0x100] sm:$0xff]
        %v264 = vld [vmem:[%s180 + $0x108] sm:$0xff]
        %v265 = vld [vmem:[%s180 + $0x110] sm:$0xff]
        %v266 = vld [vmem:[%s180 + $0x118] sm:$0xff]
        %v267 = vld [vmem:[%s180 + $0x120] sm:$0xff]
        %v268 = vld [vmem:[%s180 + $0x128] sm:$0xff]
        %v269 = vld [vmem:[%s180 + $0x130] sm:$0xff]
        %v270 = vld [vmem:[%s180 + $0x138] sm:$0xff]
        %v271 = vld [vmem:[%s180 + $0x140] sm:$0xff]
        %v272 = vld [vmem:[%s180 + $0x148] sm:$0xff]
        %v273 = vld [vmem:[%s180 + $0x150] sm:$0xff]
        %v274 = vld [vmem:[%s180 + $0x158] sm:$0xff]
        %v275 = vld [vmem:[%s180 + $0x160] sm:$0xff]
        %v276 = vld [vmem:[%s180 + $0x168] sm:$0xff]
        %v277 = vld [vmem:[%s180 + $0x170] sm:$0xff]
        %v278 = vld [vmem:[%s180 + $0x178] sm:$0xff]
        %v279 = vld [vmem:[%s180 + $0x180] sm:$0xff]
        %v280 = vld [vmem:[%s180 + $0x188] sm:$0xff]
        %v281 = vld [vmem:[%s180 + $0x190] sm:$0xff]
        %v282 = vld [vmem:[%s180 + $0x198] sm:$0xff]
        %v283 = vld [vmem:[%s180 + $0x1a0] sm:$0xff]
        %v284 = vld [vmem:[%s180 + $0x1a8] sm:$0xff]
        %v285 = vld [vmem:[%s180 + $0x1b0] sm:$0xff]
        %v286 = vld [vmem:[%s180 + $0x1b8] sm:$0xff]
        %v287 = vld [vmem:[%s180 + $0x1c0] sm:$0xff]
        %v288 = vld [vmem:[%s180 + $0x1c8] sm:$0xff]
        %v289 = vld [vmem:[%s180 + $0x1d0] sm:$0xff]
        %v290 = vld [vmem:[%s180 + $0x1d8] sm:$0xff]
        %v291 = vld [vmem:[%s180 + $0x1e0] sm:$0xff]
        %v292 = vld [vmem:[%s180 + $0x1e8] sm:$0xff]
        %v293 = vld [vmem:[%s180 + $0x1f0] sm:$0xff]
        %v294 = vld [vmem:[%s180 + $0x1f8] sm:$0xff]
        %v295 = vld [vmem:[%s180 + $0x200] sm:$0xff]
        %v296 = vld [vmem:[%s180 + $0x208] sm:$0xff]
        %v297 = vld [vmem:[%s180 + $0x210] sm:$0xff]
        %v298 = vld [vmem:[%s180 + $0x218] sm:$0xff]
        %v299 = vld [vmem:[%s180 + $0x220] sm:$0xff]
        %v300 = vld [vmem:[%s180 + $0x228] sm:$0xff]
        %v301 = vld [vmem:[%s180 + $0x230] sm:$0xff]
        %v302 = vld [vmem:[%s180 + $0x238] sm:$0xff]
        %v303 = vld [vmem:[%s180 + $0x240] sm:$0xff]
        %v304 = vld [vmem:[%s180 + $0x248] sm:$0xff]
        %v305 = vld [vmem:[%s180 + $0x250] sm:$0xff]
        %v306 = vld [vmem:[%s180 + $0x258] sm:$0xff]
        %v307 = vld [vmem:[%s180 + $0x260] sm:$0xff]
        %v308 = vld [vmem:[%s180 + $0x268] sm:$0xff]
        %v309 = vld [vmem:[%s180 + $0x270] sm:$0xff]
        %v310 = vld [vmem:[%s180 + $0x278] sm:$0xff]
        %v311 = vld [vmem:[%s180 + $0x280] sm:$0xff]
        %v312 = vld [vmem:[%s180 + $0x288] sm:$0xff]
        %v313 = vld [vmem:[%s180 + $0x290] sm:$0xff]
        %v314 = vld [vmem:[%s180 + $0x298] sm:$0xff]
        %v315 = vld [vmem:[%s180 + $0x2a0] sm:$0xff]
        %v316 = vld [vmem:[%s180 + $0x2a8] sm:$0xff]
        %v317 = vld [vmem:[%s180 + $0x2b0] sm:$0xff]
        %v318 = vld [vmem:[%s180 + $0x2b8] sm:$0xff]
        %v319 = vld [vmem:[%s180 + $0x2c0] sm:$0xff]
        %v320 = vld [vmem:[%s180 + $0x2c8] sm:$0xff]
        %v321 = vld [vmem:[%s180 + $0x2d0] sm:$0xff]
        %v322 = vld [vmem:[%s180 + $0x2d8] sm:$0xff]
        %v323 = vld [vmem:[%s180 + $0x2e0] sm:$0xff]
        %v324 = vld [vmem:[%s180 + $0x2e8] sm:$0xff]
        %v325 = vld [vmem:[%s180 + $0x2f0] sm:$0xff]
        %v326 = vld [vmem:[%s180 + $0x2f8] sm:$0xff]
        %v327 = vld [vmem:[%s180 + $0x300] sm:$0xff]
        %v328 = vld [vmem:[%s180 + $0x308] sm:$0xff]
        %v329 = vld [vmem:[%s180 + $0x310] sm:$0xff]
        %v330 = vld [vmem:[%s180 + $0x318] sm:$0xff]
        %v331 = vld [vmem:[%s180 + $0x320] sm:$0xff]
        %v332 = vld [vmem:[%s180 + $0x328] sm:$0xff]
        %v333 = vld [vmem:[%s180 + $0x330] sm:$0xff]
        %v334 = vld [vmem:[%s180 + $0x338] sm:$0xff]
        %v335 = vld [vmem:[%s180 + $0x340] sm:$0xff]
        %v336 = vld [vmem:[%s180 + $0x348] sm:$0xff]
        %v337 = vld [vmem:[%s180 + $0x350] sm:$0xff]
        %v338 = vld [vmem:[%s180 + $0x358] sm:$0xff]
        %v339 = vld [vmem:[%s180 + $0x360] sm:$0xff]
        %v340 = vld [vmem:[%s180 + $0x368] sm:$0xff]
        %v341 = vld [vmem:[%s180 + $0x370] sm:$0xff]
        %v342 = vld [vmem:[%s180 + $0x378] sm:$0xff]
        %v343 = vld [vmem:[%s180 + $0x380] sm:$0xff]
        %v344 = vld [vmem:[%s180 + $0x388] sm:$0xff]
        %v345 = vld [vmem:[%s180 + $0x390] sm:$0xff]
        %v346 = vld [vmem:[%s180 + $0x398] sm:$0xff]
        %v347 = vld [vmem:[%s180 + $0x3a0] sm:$0xff]
        %v348 = vld [vmem:[%s180 + $0x3a8] sm:$0xff]
        %v349 = vld [vmem:[%s180 + $0x3b0] sm:$0xff]
        %v350 = vld [vmem:[%s180 + $0x3b8] sm:$0xff]
        %v351 = vld [vmem:[%s180 + $0x3c0] sm:$0xff]
        %v352 = vld [vmem:[%s180 + $0x3c8] sm:$0xff]
        %v353 = vld [vmem:[%s180 + $0x3d0] sm:$0xff]
        %v354 = vld [vmem:[%s180 + $0x3d8] sm:$0xff]
        %v355 = vld [vmem:[%s180 + $0x3e0] sm:$0xff]
        %v356 = vld [vmem:[%s180 + $0x3e8] sm:$0xff]
        %v357 = vld [vmem:[%s189] sm:$0xff]
        %v358 = vld [vmem:[%s189 + $0x8] sm:$0xff]
        %v359 = vld [vmem:[%s189 + $0x10] sm:$0xff]
        %v360 = vld [vmem:[%s189 + $0x18] sm:$0xff]
        %v361 = vld [vmem:[%s189 + $0x20] sm:$0xff]
        %v362 = vld [vmem:[%s189 + $0x28] sm:$0xff]
        %v363 = vld [vmem:[%s189 + $0x30] sm:$0xff]
        %v364 = vld [vmem:[%s189 + $0x38] sm:$0xff]
        %v365 = vld [vmem:[%s189 + $0x40] sm:$0xff]
        %v366 = vld [vmem:[%s189 + $0x48] sm:$0xff]
        %v367 = vld [vmem:[%s189 + $0x50] sm:$0xff]
        %v368 = vld [vmem:[%s189 + $0x58] sm:$0xff]
        %v369 = vld [vmem:[%s189 + $0x60] sm:$0xff]
        %v370 = vld [vmem:[%s189 + $0x68] sm:$0xff]
        %v371 = vld [vmem:[%s189 + $0x70] sm:$0xff]
        %v372 = vld [vmem:[%s189 + $0x78] sm:$0xff]
        %v373 = vld [vmem:[%s189 + $0x80] sm:$0xff]
        %v374 = vld [vmem:[%s189 + $0x88] sm:$0xff]
        %v375 = vld [vmem:[%s189 + $0x90] sm:$0xff]
        %v376 = vld [vmem:[%s189 + $0x98] sm:$0xff]
        %v377 = vld [vmem:[%s189 + $0xa0] sm:$0xff]
        %v378 = vld [vmem:[%s189 + $0xa8] sm:$0xff]
        %v379 = vld [vmem:[%s189 + $0xb0] sm:$0xff]
        %v380 = vld [vmem:[%s189 + $0xb8] sm:$0xff]
        %v381 = vld [vmem:[%s189 + $0xc0] sm:$0xff]
        %v382 = vld [vmem:[%s189 + $0xc8] sm:$0xff]
        %v383 = vld [vmem:[%s189 + $0xd0] sm:$0xff]
        %v384 = vld [vmem:[%s189 + $0xd8] sm:$0xff]
        %v385 = vld [vmem:[%s189 + $0xe0] sm:$0xff]
        %v386 = vld [vmem:[%s189 + $0xe8] sm:$0xff]
        %v387 = vld [vmem:[%s189 + $0xf0] sm:$0xff]
        %v388 = vld [vmem:[%s189 + $0xf8] sm:$0xff]
        %v389 = vld [vmem:[%s189 + $0x100] sm:$0xff]
        %v390 = vld [vmem:[%s189 + $0x108] sm:$0xff]
        %v391 = vld [vmem:[%s189 + $0x110] sm:$0xff]
        %v392 = vld [vmem:[%s189 + $0x118] sm:$0xff]
        %v393 = vld [vmem:[%s189 + $0x120] sm:$0xff]
        %v394 = vld [vmem:[%s189 + $0x128] sm:$0xff]
        %v395 = vld [vmem:[%s189 + $0x130] sm:$0xff]
        %v396 = vld [vmem:[%s189 + $0x138] sm:$0xff]
        %v397 = vld [vmem:[%s189 + $0x140] sm:$0xff]
        %v398 = vld [vmem:[%s189 + $0x148] sm:$0xff]
        %v399 = vld [vmem:[%s189 + $0x150] sm:$0xff]
        %v400 = vld [vmem:[%s189 + $0x158] sm:$0xff]
        %v401 = vld [vmem:[%s189 + $0x160] sm:$0xff]
        %v402 = vld [vmem:[%s189 + $0x168] sm:$0xff]
        %v403 = vld [vmem:[%s189 + $0x170] sm:$0xff]
        %v404 = vld [vmem:[%s189 + $0x178] sm:$0xff]
        %v405 = vld [vmem:[%s189 + $0x180] sm:$0xff]
        %v406 = vld [vmem:[%s189 + $0x188] sm:$0xff]
        %v407 = vld [vmem:[%s189 + $0x190] sm:$0xff]
        %v408 = vld [vmem:[%s189 + $0x198] sm:$0xff]
        %v409 = vld [vmem:[%s189 + $0x1a0] sm:$0xff]
        %v410 = vld [vmem:[%s189 + $0x1a8] sm:$0xff]
        %v411 = vld [vmem:[%s189 + $0x1b0] sm:$0xff]
        %v412 = vld [vmem:[%s189 + $0x1b8] sm:$0xff]
        %v413 = vld [vmem:[%s189 + $0x1c0] sm:$0xff]
        %v414 = vld [vmem:[%s189 + $0x1c8] sm:$0xff]
        %v415 = vld [vmem:[%s189 + $0x1d0] sm:$0xff]
        %v416 = vld [vmem:[%s189 + $0x1d8] sm:$0xff]
        %v417 = vld [vmem:[%s189 + $0x1e0] sm:$0xff]
        %v418 = vld [vmem:[%s189 + $0x1e8] sm:$0xff]
        %v419 = vld [vmem:[%s189 + $0x1f0] sm:$0xff]
        %v420 = vld [vmem:[%s189 + $0x1f8] sm:$0xff]
        %v421 = vld [vmem:[%s189 + $0x200] sm:$0xff]
        %v422 = vld [vmem:[%s189 + $0x208] sm:$0xff]
        %v423 = vld [vmem:[%s189 + $0x210] sm:$0xff]
        %v424 = vld [vmem:[%s189 + $0x218] sm:$0xff]
        %v425 = vld [vmem:[%s189 + $0x220] sm:$0xff]
        %v426 = vld [vmem:[%s189 + $0x228] sm:$0xff]
        %v427 = vld [vmem:[%s189 + $0x230] sm:$0xff]
        %v428 = vld [vmem:[%s189 + $0x238] sm:$0xff]
        %v429 = vld [vmem:[%s189 + $0x240] sm:$0xff]
        %v430 = vld [vmem:[%s189 + $0x248] sm:$0xff]
        %v431 = vld [vmem:[%s189 + $0x250] sm:$0xff]
        %v432 = vld [vmem:[%s189 + $0x258] sm:$0xff]
        %v433 = vld [vmem:[%s189 + $0x260] sm:$0xff]
        %v434 = vld [vmem:[%s189 + $0x268] sm:$0xff]
        %v435 = vld [vmem:[%s189 + $0x270] sm:$0xff]
        %v436 = vld [vmem:[%s189 + $0x278] sm:$0xff]
        %v437 = vld [vmem:[%s189 + $0x280] sm:$0xff]
        %v438 = vld [vmem:[%s189 + $0x288] sm:$0xff]
        %v439 = vld [vmem:[%s189 + $0x290] sm:$0xff]
        %v440 = vld [vmem:[%s189 + $0x298] sm:$0xff]
        %v441 = vld [vmem:[%s189 + $0x2a0] sm:$0xff]
        %v442 = vld [vmem:[%s189 + $0x2a8] sm:$0xff]
        %v443 = vld [vmem:[%s189 + $0x2b0] sm:$0xff]
        %v444 = vld [vmem:[%s189 + $0x2b8] sm:$0xff]
        %v445 = vld [vmem:[%s189 + $0x2c0] sm:$0xff]
        %v446 = vld [vmem:[%s189 + $0x2c8] sm:$0xff]
        %v447 = vld [vmem:[%s189 + $0x2d0] sm:$0xff]
        %v448 = vld [vmem:[%s189 + $0x2d8] sm:$0xff]
        %v449 = vld [vmem:[%s189 + $0x2e0] sm:$0xff]
        %v450 = vld [vmem:[%s189 + $0x2e8] sm:$0xff]
        %v451 = vld [vmem:[%s189 + $0x2f0] sm:$0xff]
        %v452 = vld [vmem:[%s189 + $0x2f8] sm:$0xff]
        %v453 = vld [vmem:[%s189 + $0x300] sm:$0xff]
        %v454 = vld [vmem:[%s189 + $0x308] sm:$0xff]
        %v455 = vld [vmem:[%s189 + $0x310] sm:$0xff]
        %v456 = vld [vmem:[%s189 + $0x318] sm:$0xff]
        %v457 = vld [vmem:[%s189 + $0x320] sm:$0xff]
        %v458 = vld [vmem:[%s189 + $0x328] sm:$0xff]
        %v459 = vld [vmem:[%s189 + $0x330] sm:$0xff]
        %v460 = vld [vmem:[%s189 + $0x338] sm:$0xff]
        %v461 = vld [vmem:[%s189 + $0x340] sm:$0xff]
        %v462 = vld [vmem:[%s189 + $0x348] sm:$0xff]
        %v463 = vld [vmem:[%s189 + $0x350] sm:$0xff]
        %v464 = vld [vmem:[%s189 + $0x358] sm:$0xff]
        %v465 = vld [vmem:[%s189 + $0x360] sm:$0xff]
        %v466 = vld [vmem:[%s189 + $0x368] sm:$0xff]
        %v467 = vld [vmem:[%s189 + $0x370] sm:$0xff]
        %v468 = vld [vmem:[%s189 + $0x378] sm:$0xff]
        %v469 = vld [vmem:[%s189 + $0x380] sm:$0xff]
        %v470 = vld [vmem:[%s189 + $0x388] sm:$0xff]
        %v471 = vld [vmem:[%s189 + $0x390] sm:$0xff]
        %v472 = vld [vmem:[%s189 + $0x398] sm:$0xff]
        %v473 = vld [vmem:[%s189 + $0x3a0] sm:$0xff]
        %v474 = vld [vmem:[%s189 + $0x3a8] sm:$0xff]
        %v475 = vld [vmem:[%s189 + $0x3b0] sm:$0xff]
        %v476 = vld [vmem:[%s189 + $0x3b8] sm:$0xff]
        %v477 = vld [vmem:[%s189 + $0x3c0] sm:$0xff]
        %v478 = vld [vmem:[%s189 + $0x3c8] sm:$0xff]
        %v479 = vld [vmem:[%s189 + $0x3d0] sm:$0xff]
        %v480 = vld [vmem:[%s189 + $0x3d8] sm:$0xff]
        %v481 = vld [vmem:[%s189 + $0x3e0] sm:$0xff]
        %v482 = vld [vmem:[%s189 + $0x3e8] sm:$0xff]
        %v483 = vmul.f32 %v231, %v357
        %v484 = vmul.f32 %v232, %v358
        %v485 = vmul.f32 %v233, %v359
        %v486 = vmul.f32 %v234, %v360
        %v487 = vmul.f32 %v235, %v361
        %v488 = vmul.f32 %v236, %v362
        %v489 = vmul.f32 %v237, %v363
        %v490 = vmul.f32 %v238, %v364
        %v491 = vmul.f32 %v239, %v365
        %v492 = vmul.f32 %v240, %v366
        %v493 = vmul.f32 %v241, %v367
        %v494 = vmul.f32 %v242, %v368
        %v495 = vmul.f32 %v243, %v369
        %v496 = vmul.f32 %v244, %v370
        %v497 = vmul.f32 %v245, %v371
        %v498 = vmul.f32 %v246, %v372
        %v499 = vmul.f32 %v247, %v373
        %v500 = vmul.f32 %v248, %v374
        %v501 = vmul.f32 %v249, %v375
        %v502 = vmul.f32 %v250, %v376
        %v503 = vmul.f32 %v251, %v377
        %v504 = vmul.f32 %v252, %v378
        %v505 = vmul.f32 %v253, %v379
        %v506 = vmul.f32 %v254, %v380
        %v507 = vmul.f32 %v255, %v381
        %v508 = vmul.f32 %v256, %v382
        %v509 = vmul.f32 %v257, %v383
        %v510 = vmul.f32 %v258, %v384
        %v511 = vmul.f32 %v259, %v385
        %v512 = vmul.f32 %v260, %v386
        %v513 = vmul.f32 %v261, %v387
        %v514 = vmul.f32 %v262, %v388
        %v515 = vmul.f32 %v263, %v389
        %v516 = vmul.f32 %v264, %v390
        %v517 = vmul.f32 %v265, %v391
        %v518 = vmul.f32 %v266, %v392
        %v519 = vmul.f32 %v267, %v393
        %v520 = vmul.f32 %v268, %v394
        %v521 = vmul.f32 %v269, %v395
        %v522 = vmul.f32 %v270, %v396
        %v523 = vmul.f32 %v271, %v397
        %v524 = vmul.f32 %v272, %v398
        %v525 = vmul.f32 %v273, %v399
        %v526 = vmul.f32 %v274, %v400
        %v527 = vmul.f32 %v275, %v401
        %v528 = vmul.f32 %v276, %v402
        %v529 = vmul.f32 %v277, %v403
        %v530 = vmul.f32 %v278, %v404
        %v531 = vmul.f32 %v279, %v405
        %v532 = vmul.f32 %v280, %v406
        %v533 = vmul.f32 %v281, %v407
        %v534 = vmul.f32 %v282, %v408
        %v535 = vmul.f32 %v283, %v409
        %v536 = vmul.f32 %v284, %v410
        %v537 = vmul.f32 %v285, %v411
        %v538 = vmul.f32 %v286, %v412
        %v539 = vmul.f32 %v287, %v413
        %v540 = vmul.f32 %v288, %v414
        %v541 = vmul.f32 %v289, %v415
        %v542 = vmul.f32 %v290, %v416
        %v543 = vmul.f32 %v291, %v417
        %v544 = vmul.f32 %v292, %v418
        %v545 = vmul.f32 %v293, %v419
        %v546 = vmul.f32 %v294, %v420
        %v547 = vmul.f32 %v295, %v421
        %v548 = vmul.f32 %v296, %v422
        %v549 = vmul.f32 %v297, %v423
        %v550 = vmul.f32 %v298, %v424
        %v551 = vmul.f32 %v299, %v425
        %v552 = vmul.f32 %v300, %v426
        %v553 = vmul.f32 %v301, %v427
        %v554 = vmul.f32 %v302, %v428
        %v555 = vmul.f32 %v303, %v429
        %v556 = vmul.f32 %v304, %v430
        %v557 = vmul.f32 %v305, %v431
        %v558 = vmul.f32 %v306, %v432
        %v559 = vmul.f32 %v307, %v433
        %v560 = vmul.f32 %v308, %v434
        %v561 = vmul.f32 %v309, %v435
        %v562 = vmul.f32 %v310, %v436
        %v563 = vmul.f32 %v311, %v437
        %v564 = vmul.f32 %v312, %v438
        %v565 = vmul.f32 %v313, %v439
        %v566 = vmul.f32 %v314, %v440
        %v567 = vmul.f32 %v315, %v441
        %v568 = vmul.f32 %v316, %v442
        %v569 = vmul.f32 %v317, %v443
        %v570 = vmul.f32 %v318, %v444
        %v571 = vmul.f32 %v319, %v445
        %v572 = vmul.f32 %v320, %v446
        %v573 = vmul.f32 %v321, %v447
        %v574 = vmul.f32 %v322, %v448
        %v575 = vmul.f32 %v323, %v449
        %v576 = vmul.f32 %v324, %v450
        %v577 = vmul.f32 %v325, %v451
        %v578 = vmul.f32 %v326, %v452
        %v579 = vmul.f32 %v327, %v453
        %v580 = vmul.f32 %v328, %v454
        %v581 = vmul.f32 %v329, %v455
        %v582 = vmul.f32 %v330, %v456
        %v583 = vmul.f32 %v331, %v457
        %v584 = vmul.f32 %v332, %v458
        %v585 = vmul.f32 %v333, %v459
        %v586 = vmul.f32 %v334, %v460
        %v587 = vmul.f32 %v335, %v461
        %v588 = vmul.f32 %v336, %v462
        %v589 = vmul.f32 %v337, %v463
        %v590 = vmul.f32 %v338, %v464
        %v591 = vmul.f32 %v339, %v465
        %v592 = vmul.f32 %v340, %v466
        %v593 = vmul.f32 %v341, %v467
        %v594 = vmul.f32 %v342, %v468
        %v595 = vmul.f32 %v343, %v469
        %v596 = vmul.f32 %v344, %v470
        %v597 = vmul.f32 %v345, %v471
        %v598 = vmul.f32 %v346, %v472
        %v599 = vmul.f32 %v347, %v473
        %v600 = vmul.f32 %v348, %v474
        %v601 = vmul.f32 %v349, %v475
        %v602 = vmul.f32 %v350, %v476
        %v603 = vmul.f32 %v351, %v477
        %v604 = vmul.f32 %v352, %v478
        %v605 = vmul.f32 %v353, %v479
        %v606 = vmul.f32 %v354, %v480
        %v607 = vmul.f32 %v355, %v481
        %v608 = vmul.f32 %v356, %v482
        %v609 = vadd.f32 %v483, %v484
        %610 = vadd.xlane.f32.xlu0 %v609
        %v611 = vpop.xlane.xlu0 %610
        %v612 = vadd.f32 %v485, %v486
        %613 = vadd.xlane.f32.xlu0 %v612
        %v614 = vpop.xlane.xlu0 %613
        %v615 = vadd.f32 %v487, %v488
        %616 = vadd.xlane.f32.xlu0 %v615
        %v617 = vpop.xlane.xlu0 %616
        %v618 = vadd.f32 %v489, %v490
        %619 = vadd.xlane.f32.xlu0 %v618
        %v620 = vpop.xlane.xlu0 %619
        %v621 = vadd.f32 %v491, %v492
        %622 = vadd.xlane.f32.xlu0 %v621
        %v623 = vpop.xlane.xlu0 %622
        %v624 = vadd.f32 %v493, %v494
        %625 = vadd.xlane.f32.xlu0 %v624
        %v626 = vpop.xlane.xlu0 %625
        %v627 = vadd.f32 %v495, %v496
        %628 = vadd.xlane.f32.xlu0 %v627
        %v629 = vpop.xlane.xlu0 %628
        %v630 = vadd.f32 %v497, %v498
        %631 = vadd.xlane.f32.xlu0 %v630
        %v632 = vpop.xlane.xlu0 %631
        %v633 = vadd.f32 %v499, %v500
        %634 = vadd.xlane.f32.xlu0 %v633
        %v635 = vpop.xlane.xlu0 %634
        %v636 = vadd.f32 %v501, %v502
        %637 = vadd.xlane.f32.xlu0 %v636
        %v638 = vpop.xlane.xlu0 %637
        %v639 = vadd.f32 %v503, %v504
        %640 = vadd.xlane.f32.xlu0 %v639
        %v641 = vpop.xlane.xlu0 %640
        %v642 = vadd.f32 %v505, %v506
        %643 = vadd.xlane.f32.xlu0 %v642
        %v644 = vpop.xlane.xlu0 %643
        %v645 = vadd.f32 %v507, %v508
        %646 = vadd.xlane.f32.xlu0 %v645
        %v647 = vpop.xlane.xlu0 %646
        %v648 = vadd.f32 %v509, %v510
        %649 = vadd.xlane.f32.xlu0 %v648
        %v650 = vpop.xlane.xlu0 %649
        %v651 = vadd.f32 %v511, %v512
        %652 = vadd.xlane.f32.xlu0 %v651
        %v653 = vpop.xlane.xlu0 %652
        %v654 = vadd.f32 %v513, %v514
        %655 = vadd.xlane.f32.xlu0 %v654
        %v656 = vpop.xlane.xlu0 %655
        %v657 = vadd.f32 %v515, %v516
        %658 = vadd.xlane.f32.xlu0 %v657
        %v659 = vpop.xlane.xlu0 %658
        %v660 = vadd.f32 %v517, %v518
        %661 = vadd.xlane.f32.xlu0 %v660
        %v662 = vpop.xlane.xlu0 %661
        %v663 = vadd.f32 %v519, %v520
        %664 = vadd.xlane.f32.xlu0 %v663
        %v665 = vpop.xlane.xlu0 %664
        %v666 = vadd.f32 %v521, %v522
        %667 = vadd.xlane.f32.xlu0 %v666
        %v668 = vpop.xlane.xlu0 %667
        %v669 = vadd.f32 %v523, %v524
        %670 = vadd.xlane.f32.xlu0 %v669
        %v671 = vpop.xlane.xlu0 %670
        %v672 = vadd.f32 %v525, %v526
        %673 = vadd.xlane.f32.xlu0 %v672
        %v674 = vpop.xlane.xlu0 %673
        %v675 = vadd.f32 %v527, %v528
        %676 = vadd.xlane.f32.xlu0 %v675
        %v677 = vpop.xlane.xlu0 %676
        %v678 = vadd.f32 %v529, %v530
        %679 = vadd.xlane.f32.xlu0 %v678
        %v680 = vpop.xlane.xlu0 %679
        %v681 = vadd.f32 %v531, %v532
        %682 = vadd.xlane.f32.xlu0 %v681
        %v683 = vpop.xlane.xlu0 %682
        %v684 = vadd.f32 %v533, %v534
        %685 = vadd.xlane.f32.xlu0 %v684
        %v686 = vpop.xlane.xlu0 %685
        %v687 = vadd.f32 %v535, %v536
        %688 = vadd.xlane.f32.xlu0 %v687
        %v689 = vpop.xlane.xlu0 %688
        %v690 = vadd.f32 %v537, %v538
        %691 = vadd.xlane.f32.xlu0 %v690
        %v692 = vpop.xlane.xlu0 %691
        %v693 = vadd.f32 %v539, %v540
        %694 = vadd.xlane.f32.xlu0 %v693
        %v695 = vpop.xlane.xlu0 %694
        %v696 = vadd.f32 %v541, %v542
        %697 = vadd.xlane.f32.xlu0 %v696
        %v698 = vpop.xlane.xlu0 %697
        %v699 = vadd.f32 %v543, %v544
        %700 = vadd.xlane.f32.xlu0 %v699
        %v701 = vpop.xlane.xlu0 %700
        %v702 = vadd.f32 %v545, %v546
        %703 = vadd.xlane.f32.xlu0 %v702
        %v704 = vpop.xlane.xlu0 %703
        %v705 = vadd.f32 %v547, %v548
        %706 = vadd.xlane.f32.xlu0 %v705
        %v707 = vpop.xlane.xlu0 %706
        %v708 = vadd.f32 %v549, %v550
        %709 = vadd.xlane.f32.xlu0 %v708
        %v710 = vpop.xlane.xlu0 %709
        %v711 = vadd.f32 %v551, %v552
        %712 = vadd.xlane.f32.xlu0 %v711
        %v713 = vpop.xlane.xlu0 %712
        %v714 = vadd.f32 %v553, %v554
        %715 = vadd.xlane.f32.xlu0 %v714
        %v716 = vpop.xlane.xlu0 %715
        %v717 = vadd.f32 %v555, %v556
        %718 = vadd.xlane.f32.xlu0 %v717
        %v719 = vpop.xlane.xlu0 %718
        %v720 = vadd.f32 %v557, %v558
        %721 = vadd.xlane.f32.xlu0 %v720
        %v722 = vpop.xlane.xlu0 %721
        %v723 = vadd.f32 %v559, %v560
        %724 = vadd.xlane.f32.xlu0 %v723
        %v725 = vpop.xlane.xlu0 %724
        %v726 = vadd.f32 %v561, %v562
        %727 = vadd.xlane.f32.xlu0 %v726
        %v728 = vpop.xlane.xlu0 %727
        %v729 = vadd.f32 %v563, %v564
        %730 = vadd.xlane.f32.xlu0 %v729
        %v731 = vpop.xlane.xlu0 %730
        %v732 = vadd.f32 %v565, %v566
        %733 = vadd.xlane.f32.xlu0 %v732
        %v734 = vpop.xlane.xlu0 %733
        %v735 = vadd.f32 %v567, %v568
        %736 = vadd.xlane.f32.xlu0 %v735
        %v737 = vpop.xlane.xlu0 %736
        %v738 = vadd.f32 %v569, %v570
        %739 = vadd.xlane.f32.xlu0 %v738
        %v740 = vpop.xlane.xlu0 %739
        %v741 = vadd.f32 %v571, %v572
        %742 = vadd.xlane.f32.xlu0 %v741
        %v743 = vpop.xlane.xlu0 %742
        %v744 = vadd.f32 %v573, %v574
        %745 = vadd.xlane.f32.xlu0 %v744
        %v746 = vpop.xlane.xlu0 %745
        %v747 = vadd.f32 %v575, %v576
        %748 = vadd.xlane.f32.xlu0 %v747
        %v749 = vpop.xlane.xlu0 %748
        %v750 = vadd.f32 %v577, %v578
        %751 = vadd.xlane.f32.xlu0 %v750
        %v752 = vpop.xlane.xlu0 %751
        %v753 = vadd.f32 %v579, %v580
        %754 = vadd.xlane.f32.xlu0 %v753
        %v755 = vpop.xlane.xlu0 %754
        %v756 = vadd.f32 %v581, %v582
        %757 = vadd.xlane.f32.xlu0 %v756
        %v758 = vpop.xlane.xlu0 %757
        %v759 = vadd.f32 %v583, %v584
        %760 = vadd.xlane.f32.xlu0 %v759
        %v761 = vpop.xlane.xlu0 %760
        %v762 = vadd.f32 %v585, %v586
        %763 = vadd.xlane.f32.xlu0 %v762
        %v764 = vpop.xlane.xlu0 %763
        %v765 = vadd.f32 %v587, %v588
        %766 = vadd.xlane.f32.xlu0 %v765
        %v767 = vpop.xlane.xlu0 %766
        %v768 = vadd.f32 %v589, %v590
        %769 = vadd.xlane.f32.xlu0 %v768
        %v770 = vpop.xlane.xlu0 %769
        %v771 = vadd.f32 %v591, %v592
        %772 = vadd.xlane.f32.xlu0 %v771
        %v773 = vpop.xlane.xlu0 %772
        %v774 = vadd.f32 %v593, %v594
        %775 = vadd.xlane.f32.xlu0 %v774
        %v776 = vpop.xlane.xlu0 %775
        %v777 = vadd.f32 %v595, %v596
        %778 = vadd.xlane.f32.xlu0 %v777
        %v779 = vpop.xlane.xlu0 %778
        %v780 = vadd.f32 %v597, %v598
        %781 = vadd.xlane.f32.xlu0 %v780
        %v782 = vpop.xlane.xlu0 %781
        %v783 = vadd.f32 %v599, %v600
        %784 = vadd.xlane.f32.xlu0 %v783
        %v785 = vpop.xlane.xlu0 %784
        %v786 = vadd.f32 %v601, %v602
        %787 = vadd.xlane.f32.xlu0 %v786
        %v788 = vpop.xlane.xlu0 %787
        %v789 = vadd.f32 %v603, %v604
        %790 = vadd.xlane.f32.xlu0 %v789
        %v791 = vpop.xlane.xlu0 %790
        %v792 = vadd.f32 %v605, %v606
        %793 = vadd.xlane.f32.xlu0 %v792
        %v794 = vpop.xlane.xlu0 %793
        %v795 = vadd.f32 %v607, %v608
        %796 = vadd.xlane.f32.xlu0 %v795
        %v797 = vpop.xlane.xlu0 %796
        %vm798 = vcmask 7168
        %799 = vst.msk [vmem:[%s213] sm:$0xff] %vm798, %v611
        %800 = vst.msk [vmem:[%s213 + $0x8] sm:$0xff] %vm798, %v614
        %801 = vst.msk [vmem:[%s213 + $0x10] sm:$0xff] %vm798, %v617
        %802 = vst.msk [vmem:[%s213 + $0x18] sm:$0xff] %vm798, %v620
        %803 = vst.msk [vmem:[%s213 + $0x20] sm:$0xff] %vm798, %v623
        %804 = vst.msk [vmem:[%s213 + $0x28] sm:$0xff] %vm798, %v626
        %805 = vst.msk [vmem:[%s213 + $0x30] sm:$0xff] %vm798, %v629
        %806 = vst.msk [vmem:[%s213 + $0x38] sm:$0xff] %vm798, %v632
        %807 = vst.msk [vmem:[%s213 + $0x40] sm:$0xff] %vm798, %v635
        %808 = vst.msk [vmem:[%s213 + $0x48] sm:$0xff] %vm798, %v638
        %809 = vst.msk [vmem:[%s213 + $0x50] sm:$0xff] %vm798, %v641
        %810 = vst.msk [vmem:[%s213 + $0x58] sm:$0xff] %vm798, %v644
        %811 = vst.msk [vmem:[%s213 + $0x60] sm:$0xff] %vm798, %v647
        %812 = vst.msk [vmem:[%s213 + $0x68] sm:$0xff] %vm798, %v650
        %813 = vst.msk [vmem:[%s213 + $0x70] sm:$0xff] %vm798, %v653
        %814 = vst.msk [vmem:[%s213 + $0x78] sm:$0xff] %vm798, %v656
        %815 = vst.msk [vmem:[%s213 + $0x80] sm:$0xff] %vm798, %v659
        %816 = vst.msk [vmem:[%s213 + $0x88] sm:$0xff] %vm798, %v662
        %817 = vst.msk [vmem:[%s213 + $0x90] sm:$0xff] %vm798, %v665
        %818 = vst.msk [vmem:[%s213 + $0x98] sm:$0xff] %vm798, %v668
        %819 = vst.msk [vmem:[%s213 + $0xa0] sm:$0xff] %vm798, %v671
        %820 = vst.msk [vmem:[%s213 + $0xa8] sm:$0xff] %vm798, %v674
        %821 = vst.msk [vmem:[%s213 + $0xb0] sm:$0xff] %vm798, %v677
        %822 = vst.msk [vmem:[%s213 + $0xb8] sm:$0xff] %vm798, %v680
        %823 = vst.msk [vmem:[%s213 + $0xc0] sm:$0xff] %vm798, %v683
        %824 = vst.msk [vmem:[%s213 + $0xc8] sm:$0xff] %vm798, %v686
        %825 = vst.msk [vmem:[%s213 + $0xd0] sm:$0xff] %vm798, %v689
        %826 = vst.msk [vmem:[%s213 + $0xd8] sm:$0xff] %vm798, %v692
        %827 = vst.msk [vmem:[%s213 + $0xe0] sm:$0xff] %vm798, %v695
        %828 = vst.msk [vmem:[%s213 + $0xe8] sm:$0xff] %vm798, %v698
        %829 = vst.msk [vmem:[%s213 + $0xf0] sm:$0xff] %vm798, %v701
        %830 = vst.msk [vmem:[%s213 + $0xf8] sm:$0xff] %vm798, %v704
        %831 = vst.msk [vmem:[%s213 + $0x100] sm:$0xff] %vm798, %v707
        %832 = vst.msk [vmem:[%s213 + $0x108] sm:$0xff] %vm798, %v710
        %833 = vst.msk [vmem:[%s213 + $0x110] sm:$0xff] %vm798, %v713
        %834 = vst.msk [vmem:[%s213 + $0x118] sm:$0xff] %vm798, %v716
        %835 = vst.msk [vmem:[%s213 + $0x120] sm:$0xff] %vm798, %v719
        %836 = vst.msk [vmem:[%s213 + $0x128] sm:$0xff] %vm798, %v722
        %837 = vst.msk [vmem:[%s213 + $0x130] sm:$0xff] %vm798, %v725
        %838 = vst.msk [vmem:[%s213 + $0x138] sm:$0xff] %vm798, %v728
        %839 = vst.msk [vmem:[%s213 + $0x140] sm:$0xff] %vm798, %v731
        %840 = vst.msk [vmem:[%s213 + $0x148] sm:$0xff] %vm798, %v734
        %841 = vst.msk [vmem:[%s213 + $0x150] sm:$0xff] %vm798, %v737
        %842 = vst.msk [vmem:[%s213 + $0x158] sm:$0xff] %vm798, %v740
        %843 = vst.msk [vmem:[%s213 + $0x160] sm:$0xff] %vm798, %v743
        %844 = vst.msk [vmem:[%s213 + $0x168] sm:$0xff] %vm798, %v746
        %845 = vst.msk [vmem:[%s213 + $0x170] sm:$0xff] %vm798, %v749
        %846 = vst.msk [vmem:[%s213 + $0x178] sm:$0xff] %vm798, %v752
        %847 = vst.msk [vmem:[%s213 + $0x180] sm:$0xff] %vm798, %v755
        %848 = vst.msk [vmem:[%s213 + $0x188] sm:$0xff] %vm798, %v758
        %849 = vst.msk [vmem:[%s213 + $0x190] sm:$0xff] %vm798, %v761
        %850 = vst.msk [vmem:[%s213 + $0x198] sm:$0xff] %vm798, %v764
        %851 = vst.msk [vmem:[%s213 + $0x1a0] sm:$0xff] %vm798, %v767
        %852 = vst.msk [vmem:[%s213 + $0x1a8] sm:$0xff] %vm798, %v770
        %853 = vst.msk [vmem:[%s213 + $0x1b0] sm:$0xff] %vm798, %v773
        %854 = vst.msk [vmem:[%s213 + $0x1b8] sm:$0xff] %vm798, %v776
        %855 = vst.msk [vmem:[%s213 + $0x1c0] sm:$0xff] %vm798, %v779
        %856 = vst.msk [vmem:[%s213 + $0x1c8] sm:$0xff] %vm798, %v782
        %857 = vst.msk [vmem:[%s213 + $0x1d0] sm:$0xff] %vm798, %v785
        %858 = vst.msk [vmem:[%s213 + $0x1d8] sm:$0xff] %vm798, %v788
        %859 = vst.msk [vmem:[%s213 + $0x1e0] sm:$0xff] %vm798, %v791
        %860 = vst.msk [vmem:[%s213 + $0x1e8] sm:$0xff] %vm798, %v794
        %861 = vst.msk [vmem:[%s213 + $0x1f0] sm:$0xff] %vm798, %v797
        %s862 = sand.u32 %s79, 1
        %s863 = sand.u32 %s79, 1
        %s864 = smul.addr %s863, 504
        %s865 = scalar_lea.vmem [#allocation6], %s864
        // Predicated region
        $region37: #{tpu_custom_call.1} parent=27 // pred_check
          %p866 = pneg %p89
        $region38: #{tpu_custom_call.1} parent=27 // pred_check_branch
          %868 = sbr.rel (%p866) target = $region40
        $region39: #{tpu_custom_call.1} parent=27 // pred_region
          %s869 = smul.u32 63, %s19
          %s870 = ssub.s32 125, %s869
          %p871 = scmp.lt.s32.totalorder %s870, 63
          %s872 = scalar_select %p871, %s870, 63
          %s873 = smul.u32 128, %s872
          %p874 = scmp.ne.s32.totalorder 0, %s873
          %s875 = smul.addr %s869, 8
          %s876 = scalar_lea.vmem %s2, %s875
          // Predicated region
          $region41: #{tpu_custom_call.1} parent=39 // pred_check
            %p877 = pneg %p874
          $region42: #{tpu_custom_call.1} parent=39 // pred_check_branch
            %879 = sbr.rel (%p877) target = $region44
          $region43: #{tpu_custom_call.1} parent=39 // pred_region
            // Predicated region
            $region45: #{tpu_custom_call.1} parent=43 // pred_check
              _
            $region46: #{tpu_custom_call.1} parent=43 // pred_check_branch
              %881 = sbr.rel (0) target = $region48
            $region47: #{tpu_custom_call.1} parent=43 // pred_region
              // Predicated region
              $region67: #{tpu_custom_call.1} parent=47 // pred_check
                _
              $region68: #{tpu_custom_call.1} parent=47 // pred_check_branch
                %1056 = sbr.rel (0) target = $region70
              $region69: #{tpu_custom_call.1} parent=47 // pred_region
                %s1057 = sdiv.u32.pop %s872, 63
                %s1058 = srem.u32.pop %s872, 63
                // While loop
                $region71: #{tpu_custom_call.1} parent=69 // loop_pre_header
                  _
                $region72: #{tpu_custom_call.1} parent=69 // loop_header
                  %s1060 = sphi 0, %s1062
                  %p1061 = scmp.ge.s32.totalorder %s1060, %s1057
                  %s1065 = sphi 0, %s1196
                  %s1066 = sphi %s865, %s1199
                  %s1067 = sphi %s876, %s1200
                $region73: #{tpu_custom_call.1} parent=69 // loop_header_branch
                  %1064 = sbr.rel (%p1061) target = $region77
                $region74: #{tpu_custom_call.1} parent=69 // loop_body
                  %v1068 = vld [vmem:[%s1066] sm:$0xff]
                  %1069 = vst [vmem:[%s1067] sm:$0xff] %v1068
                  %v1070 = vld [vmem:[%s1066 + $0x8] sm:$0xff]
                  %1071 = vst [vmem:[%s1067 + $0x8] sm:$0xff] %v1070
                  %v1072 = vld [vmem:[%s1066 + $0x10] sm:$0xff]
                  %1073 = vst [vmem:[%s1067 + $0x10] sm:$0xff] %v1072
                  %v1074 = vld [vmem:[%s1066 + $0x18] sm:$0xff]
                  %1075 = vst [vmem:[%s1067 + $0x18] sm:$0xff] %v1074
                  %v1076 = vld [vmem:[%s1066 + $0x20] sm:$0xff]
                  %1077 = vst [vmem:[%s1067 + $0x20] sm:$0xff] %v1076
                  %v1078 = vld [vmem:[%s1066 + $0x28] sm:$0xff]
                  %1079 = vst [vmem:[%s1067 + $0x28] sm:$0xff] %v1078
                  %v1080 = vld [vmem:[%s1066 + $0x30] sm:$0xff]
                  %1081 = vst [vmem:[%s1067 + $0x30] sm:$0xff] %v1080
                  %v1082 = vld [vmem:[%s1066 + $0x38] sm:$0xff]
                  %1083 = vst [vmem:[%s1067 + $0x38] sm:$0xff] %v1082
                  %v1084 = vld [vmem:[%s1066 + $0x40] sm:$0xff]
                  %1085 = vst [vmem:[%s1067 + $0x40] sm:$0xff] %v1084
                  %v1086 = vld [vmem:[%s1066 + $0x48] sm:$0xff]
                  %1087 = vst [vmem:[%s1067 + $0x48] sm:$0xff] %v1086
                  %v1088 = vld [vmem:[%s1066 + $0x50] sm:$0xff]
                  %1089 = vst [vmem:[%s1067 + $0x50] sm:$0xff] %v1088
                  %v1090 = vld [vmem:[%s1066 + $0x58] sm:$0xff]
                  %1091 = vst [vmem:[%s1067 + $0x58] sm:$0xff] %v1090
                  %v1092 = vld [vmem:[%s1066 + $0x60] sm:$0xff]
                  %1093 = vst [vmem:[%s1067 + $0x60] sm:$0xff] %v1092
                  %v1094 = vld [vmem:[%s1066 + $0x68] sm:$0xff]
                  %1095 = vst [vmem:[%s1067 + $0x68] sm:$0xff] %v1094
                  %v1096 = vld [vmem:[%s1066 + $0x70] sm:$0xff]
                  %1097 = vst [vmem:[%s1067 + $0x70] sm:$0xff] %v1096
                  %v1098 = vld [vmem:[%s1066 + $0x78] sm:$0xff]
                  %1099 = vst [vmem:[%s1067 + $0x78] sm:$0xff] %v1098
                  %v1100 = vld [vmem:[%s1066 + $0x80] sm:$0xff]
                  %1101 = vst [vmem:[%s1067 + $0x80] sm:$0xff] %v1100
                  %v1102 = vld [vmem:[%s1066 + $0x88] sm:$0xff]
                  %1103 = vst [vmem:[%s1067 + $0x88] sm:$0xff] %v1102
                  %v1104 = vld [vmem:[%s1066 + $0x90] sm:$0xff]
                  %1105 = vst [vmem:[%s1067 + $0x90] sm:$0xff] %v1104
                  %v1106 = vld [vmem:[%s1066 + $0x98] sm:$0xff]
                  %1107 = vst [vmem:[%s1067 + $0x98] sm:$0xff] %v1106
                  %v1108 = vld [vmem:[%s1066 + $0xa0] sm:$0xff]
                  %1109 = vst [vmem:[%s1067 + $0xa0] sm:$0xff] %v1108
                  %v1110 = vld [vmem:[%s1066 + $0xa8] sm:$0xff]
                  %1111 = vst [vmem:[%s1067 + $0xa8] sm:$0xff] %v1110
                  %v1112 = vld [vmem:[%s1066 + $0xb0] sm:$0xff]
                  %1113 = vst [vmem:[%s1067 + $0xb0] sm:$0xff] %v1112
                  %v1114 = vld [vmem:[%s1066 + $0xb8] sm:$0xff]
                  %1115 = vst [vmem:[%s1067 + $0xb8] sm:$0xff] %v1114
                  %v1116 = vld [vmem:[%s1066 + $0xc0] sm:$0xff]
                  %1117 = vst [vmem:[%s1067 + $0xc0] sm:$0xff] %v1116
                  %v1118 = vld [vmem:[%s1066 + $0xc8] sm:$0xff]
                  %1119 = vst [vmem:[%s1067 + $0xc8] sm:$0xff] %v1118
                  %v1120 = vld [vmem:[%s1066 + $0xd0] sm:$0xff]
                  %1121 = vst [vmem:[%s1067 + $0xd0] sm:$0xff] %v1120
                  %v1122 = vld [vmem:[%s1066 + $0xd8] sm:$0xff]
                  %1123 = vst [vmem:[%s1067 + $0xd8] sm:$0xff] %v1122
                  %v1124 = vld [vmem:[%s1066 + $0xe0] sm:$0xff]
                  %1125 = vst [vmem:[%s1067 + $0xe0] sm:$0xff] %v1124
                  %v1126 = vld [vmem:[%s1066 + $0xe8] sm:$0xff]
                  %1127 = vst [vmem:[%s1067 + $0xe8] sm:$0xff] %v1126
                  %v1128 = vld [vmem:[%s1066 + $0xf0] sm:$0xff]
                  %1129 = vst [vmem:[%s1067 + $0xf0] sm:$0xff] %v1128
                  %v1130 = vld [vmem:[%s1066 + $0xf8] sm:$0xff]
                  %1131 = vst [vmem:[%s1067 + $0xf8] sm:$0xff] %v1130
                  %v1132 = vld [vmem:[%s1066 + $0x100] sm:$0xff]
                  %1133 = vst [vmem:[%s1067 + $0x100] sm:$0xff] %v1132
                  %v1134 = vld [vmem:[%s1066 + $0x108] sm:$0xff]
                  %1135 = vst [vmem:[%s1067 + $0x108] sm:$0xff] %v1134
                  %v1136 = vld [vmem:[%s1066 + $0x110] sm:$0xff]
                  %1137 = vst [vmem:[%s1067 + $0x110] sm:$0xff] %v1136
                  %v1138 = vld [vmem:[%s1066 + $0x118] sm:$0xff]
                  %1139 = vst [vmem:[%s1067 + $0x118] sm:$0xff] %v1138
                  %v1140 = vld [vmem:[%s1066 + $0x120] sm:$0xff]
                  %1141 = vst [vmem:[%s1067 + $0x120] sm:$0xff] %v1140
                  %v1142 = vld [vmem:[%s1066 + $0x128] sm:$0xff]
                  %1143 = vst [vmem:[%s1067 + $0x128] sm:$0xff] %v1142
                  %v1144 = vld [vmem:[%s1066 + $0x130] sm:$0xff]
                  %1145 = vst [vmem:[%s1067 + $0x130] sm:$0xff] %v1144
                  %v1146 = vld [vmem:[%s1066 + $0x138] sm:$0xff]
                  %1147 = vst [vmem:[%s1067 + $0x138] sm:$0xff] %v1146
                  %v1148 = vld [vmem:[%s1066 + $0x140] sm:$0xff]
                  %1149 = vst [vmem:[%s1067 + $0x140] sm:$0xff] %v1148
                  %v1150 = vld [vmem:[%s1066 + $0x148] sm:$0xff]
                  %1151 = vst [vmem:[%s1067 + $0x148] sm:$0xff] %v1150
                  %v1152 = vld [vmem:[%s1066 + $0x150] sm:$0xff]
                  %1153 = vst [vmem:[%s1067 + $0x150] sm:$0xff] %v1152
                  %v1154 = vld [vmem:[%s1066 + $0x158] sm:$0xff]
                  %1155 = vst [vmem:[%s1067 + $0x158] sm:$0xff] %v1154
                  %v1156 = vld [vmem:[%s1066 + $0x160] sm:$0xff]
                  %1157 = vst [vmem:[%s1067 + $0x160] sm:$0xff] %v1156
                  %v1158 = vld [vmem:[%s1066 + $0x168] sm:$0xff]
                  %1159 = vst [vmem:[%s1067 + $0x168] sm:$0xff] %v1158
                  %v1160 = vld [vmem:[%s1066 + $0x170] sm:$0xff]
                  %1161 = vst [vmem:[%s1067 + $0x170] sm:$0xff] %v1160
                  %v1162 = vld [vmem:[%s1066 + $0x178] sm:$0xff]
                  %1163 = vst [vmem:[%s1067 + $0x178] sm:$0xff] %v1162
                  %v1164 = vld [vmem:[%s1066 + $0x180] sm:$0xff]
                  %1165 = vst [vmem:[%s1067 + $0x180] sm:$0xff] %v1164
                  %v1166 = vld [vmem:[%s1066 + $0x188] sm:$0xff]
                  %1167 = vst [vmem:[%s1067 + $0x188] sm:$0xff] %v1166
                  %v1168 = vld [vmem:[%s1066 + $0x190] sm:$0xff]
                  %1169 = vst [vmem:[%s1067 + $0x190] sm:$0xff] %v1168
                  %v1170 = vld [vmem:[%s1066 + $0x198] sm:$0xff]
                  %1171 = vst [vmem:[%s1067 + $0x198] sm:$0xff] %v1170
                  %v1172 = vld [vmem:[%s1066 + $0x1a0] sm:$0xff]
                  %1173 = vst [vmem:[%s1067 + $0x1a0] sm:$0xff] %v1172
                  %v1174 = vld [vmem:[%s1066 + $0x1a8] sm:$0xff]
                  %1175 = vst [vmem:[%s1067 + $0x1a8] sm:$0xff] %v1174
                  %v1176 = vld [vmem:[%s1066 + $0x1b0] sm:$0xff]
                  %1177 = vst [vmem:[%s1067 + $0x1b0] sm:$0xff] %v1176
                  %v1178 = vld [vmem:[%s1066 + $0x1b8] sm:$0xff]
                  %1179 = vst [vmem:[%s1067 + $0x1b8] sm:$0xff] %v1178
                  %v1180 = vld [vmem:[%s1066 + $0x1c0] sm:$0xff]
                  %1181 = vst [vmem:[%s1067 + $0x1c0] sm:$0xff] %v1180
                  %v1182 = vld [vmem:[%s1066 + $0x1c8] sm:$0xff]
                  %1183 = vst [vmem:[%s1067 + $0x1c8] sm:$0xff] %v1182
                  %v1184 = vld [vmem:[%s1066 + $0x1d0] sm:$0xff]
                  %1185 = vst [vmem:[%s1067 + $0x1d0] sm:$0xff] %v1184
                  %v1186 = vld [vmem:[%s1066 + $0x1d8] sm:$0xff]
                  %1187 = vst [vmem:[%s1067 + $0x1d8] sm:$0xff] %v1186
                  %v1188 = vld [vmem:[%s1066 + $0x1e0] sm:$0xff]
                  %1189 = vst [vmem:[%s1067 + $0x1e0] sm:$0xff] %v1188
                  %v1190 = vld [vmem:[%s1066 + $0x1e8] sm:$0xff]
                  %1191 = vst [vmem:[%s1067 + $0x1e8] sm:$0xff] %v1190
                  %v1192 = vld [vmem:[%s1066 + $0x1f0] sm:$0xff]
                  %1193 = vst [vmem:[%s1067 + $0x1f0] sm:$0xff] %v1192
                  %s1194 = sadd.s32 1, %s1065
                  %p1195 = scmp.ge.s32.totalorder %s1194, %s1057
                  %s1196 = scalar_select %p1195, 0, %s1194
                  %s1197 = smul.u32 %s1196, 504
                  %s1198 = smul.u32 %s1196, 504
                  %s1199 = scalar_lea.vmem %s865, %s1197 [#allocation6]
                  %s1200 = scalar_lea.vmem %s876, %s1198
                $region75: #{tpu_custom_call.1} parent=69 // loop_footer
                  %s1062 = sadd.s32 %s1060, 1
                $region76: #{tpu_custom_call.1} parent=69 // loop_footer_branch
                  %1059 = sbr.rel target = $region72
                $region77: #{tpu_custom_call.1} parent=69 // loop_exit
                  _
                %s1201 = sdiv.u32.pop %s872, 63
                %s1202 = srem.u32.pop %s872, 63
                %s1203 = smul.u32 %s1201, 63
                %s1204 = smul.u32 8, %s1203
                %s1205 = scalar_lea.vmem %s865, %s1204 [#allocation6]
                %s1206 = smul.u32 8, %s1203
                %s1207 = scalar_lea.vmem %s876, %s1206
                // While loop
                $region78: #{tpu_custom_call.1} parent=69 // loop_pre_header
                  _
                $region79: #{tpu_custom_call.1} parent=69 // loop_header
                  %s1209 = sphi 0, %s1211
                  %p1210 = scmp.ge.s32.totalorder %s1209, %s1202
                  %s1214 = sphi 0, %s1221
                  %s1215 = sphi %s1205, %s1224
                  %s1216 = sphi %s1207, %s1225
                $region80: #{tpu_custom_call.1} parent=69 // loop_header_branch
                  %1213 = sbr.rel (%p1210) target = $region84
                $region81: #{tpu_custom_call.1} parent=69 // loop_body
                  %v1217 = vld [vmem:[%s1215] sm:$0xff]
                  %1218 = vst [vmem:[%s1216] sm:$0xff] %v1217
                  %s1219 = sadd.s32 1, %s1214
                  %p1220 = scmp.ge.s32.totalorder %s1219, %s1202
                  %s1221 = scalar_select %p1220, 0, %s1219
                  %s1222 = smul.u32 %s1221, 8
                  %s1223 = smul.u32 %s1221, 8
                  %s1224 = scalar_lea.vmem %s1205, %s1222 [#allocation6]
                  %s1225 = scalar_lea.vmem %s1207, %s1223
                $region82: #{tpu_custom_call.1} parent=69 // loop_footer
                  %s1211 = sadd.s32 %s1209, 1
                $region83: #{tpu_custom_call.1} parent=69 // loop_footer_branch
                  %1208 = sbr.rel target = $region79
                $region84: #{tpu_custom_call.1} parent=69 // loop_exit
                  _
              $region70: #{tpu_custom_call.1} parent=47 // pred_fallthru
                _
              // Predicated region
              $region85: #{tpu_custom_call.1} parent=47 // pred_check
                _
              $region86: #{tpu_custom_call.1} parent=47 // pred_check_branch
                %1227 = sbr.rel target = $region88
              $region87: #{tpu_custom_call.1} parent=47 // pred_region
                _
              $region88: #{tpu_custom_call.1} parent=47 // pred_fallthru
                _
            $region48: #{tpu_custom_call.1} parent=43 // pred_fallthru
              _
            // Predicated region
            $region49: #{tpu_custom_call.1} parent=43 // pred_check
              _
            $region50: #{tpu_custom_call.1} parent=43 // pred_check_branch
              %883 = sbr.rel target = $region52
            $region51: #{tpu_custom_call.1} parent=43 // pred_region
              %s885 = ssub.s32 256, 1
              %s886 = sdiv.u32.pop %s872, 63
              %s887 = srem.u32.pop %s872, 63
              // While loop
              $region53: #{tpu_custom_call.1} parent=51 // loop_pre_header
                _
              $region54: #{tpu_custom_call.1} parent=51 // loop_header
                %s889 = sphi 0, %s891
                %p890 = scmp.ge.s32.totalorder %s889, %s886
                %s894 = sphi 0, %s1025
                %s895 = sphi %s865, %s1028
                %s896 = sphi %s876, %s1029
              $region55: #{tpu_custom_call.1} parent=51 // loop_header_branch
                %893 = sbr.rel (%p890) target = $region59
              $region56: #{tpu_custom_call.1} parent=51 // loop_body
                %v897 = vld [vmem:[%s895] sm:%s885]
                %898 = vst [vmem:[%s896] sm:%s885] %v897
                %v899 = vld [vmem:[%s895 + $0x8] sm:%s885]
                %900 = vst [vmem:[%s896 + $0x8] sm:%s885] %v899
                %v901 = vld [vmem:[%s895 + $0x10] sm:%s885]
                %902 = vst [vmem:[%s896 + $0x10] sm:%s885] %v901
                %v903 = vld [vmem:[%s895 + $0x18] sm:%s885]
                %904 = vst [vmem:[%s896 + $0x18] sm:%s885] %v903
                %v905 = vld [vmem:[%s895 + $0x20] sm:%s885]
                %906 = vst [vmem:[%s896 + $0x20] sm:%s885] %v905
                %v907 = vld [vmem:[%s895 + $0x28] sm:%s885]
                %908 = vst [vmem:[%s896 + $0x28] sm:%s885] %v907
                %v909 = vld [vmem:[%s895 + $0x30] sm:%s885]
                %910 = vst [vmem:[%s896 + $0x30] sm:%s885] %v909
                %v911 = vld [vmem:[%s895 + $0x38] sm:%s885]
                %912 = vst [vmem:[%s896 + $0x38] sm:%s885] %v911
                %v913 = vld [vmem:[%s895 + $0x40] sm:%s885]
                %914 = vst [vmem:[%s896 + $0x40] sm:%s885] %v913
                %v915 = vld [vmem:[%s895 + $0x48] sm:%s885]
                %916 = vst [vmem:[%s896 + $0x48] sm:%s885] %v915
                %v917 = vld [vmem:[%s895 + $0x50] sm:%s885]
                %918 = vst [vmem:[%s896 + $0x50] sm:%s885] %v917
                %v919 = vld [vmem:[%s895 + $0x58] sm:%s885]
                %920 = vst [vmem:[%s896 + $0x58] sm:%s885] %v919
                %v921 = vld [vmem:[%s895 + $0x60] sm:%s885]
                %922 = vst [vmem:[%s896 + $0x60] sm:%s885] %v921
                %v923 = vld [vmem:[%s895 + $0x68] sm:%s885]
                %924 = vst [vmem:[%s896 + $0x68] sm:%s885] %v923
                %v925 = vld [vmem:[%s895 + $0x70] sm:%s885]
                %926 = vst [vmem:[%s896 + $0x70] sm:%s885] %v925
                %v927 = vld [vmem:[%s895 + $0x78] sm:%s885]
                %928 = vst [vmem:[%s896 + $0x78] sm:%s885] %v927
                %v929 = vld [vmem:[%s895 + $0x80] sm:%s885]
                %930 = vst [vmem:[%s896 + $0x80] sm:%s885] %v929
                %v931 = vld [vmem:[%s895 + $0x88] sm:%s885]
                %932 = vst [vmem:[%s896 + $0x88] sm:%s885] %v931
                %v933 = vld [vmem:[%s895 + $0x90] sm:%s885]
                %934 = vst [vmem:[%s896 + $0x90] sm:%s885] %v933
                %v935 = vld [vmem:[%s895 + $0x98] sm:%s885]
                %936 = vst [vmem:[%s896 + $0x98] sm:%s885] %v935
                %v937 = vld [vmem:[%s895 + $0xa0] sm:%s885]
                %938 = vst [vmem:[%s896 + $0xa0] sm:%s885] %v937
                %v939 = vld [vmem:[%s895 + $0xa8] sm:%s885]
                %940 = vst [vmem:[%s896 + $0xa8] sm:%s885] %v939
                %v941 = vld [vmem:[%s895 + $0xb0] sm:%s885]
                %942 = vst [vmem:[%s896 + $0xb0] sm:%s885] %v941
                %v943 = vld [vmem:[%s895 + $0xb8] sm:%s885]
                %944 = vst [vmem:[%s896 + $0xb8] sm:%s885] %v943
                %v945 = vld [vmem:[%s895 + $0xc0] sm:%s885]
                %946 = vst [vmem:[%s896 + $0xc0] sm:%s885] %v945
                %v947 = vld [vmem:[%s895 + $0xc8] sm:%s885]
                %948 = vst [vmem:[%s896 + $0xc8] sm:%s885] %v947
                %v949 = vld [vmem:[%s895 + $0xd0] sm:%s885]
                %950 = vst [vmem:[%s896 + $0xd0] sm:%s885] %v949
                %v951 = vld [vmem:[%s895 + $0xd8] sm:%s885]
                %952 = vst [vmem:[%s896 + $0xd8] sm:%s885] %v951
                %v953 = vld [vmem:[%s895 + $0xe0] sm:%s885]
                %954 = vst [vmem:[%s896 + $0xe0] sm:%s885] %v953
                %v955 = vld [vmem:[%s895 + $0xe8] sm:%s885]
                %956 = vst [vmem:[%s896 + $0xe8] sm:%s885] %v955
                %v957 = vld [vmem:[%s895 + $0xf0] sm:%s885]
                %958 = vst [vmem:[%s896 + $0xf0] sm:%s885] %v957
                %v959 = vld [vmem:[%s895 + $0xf8] sm:%s885]
                %960 = vst [vmem:[%s896 + $0xf8] sm:%s885] %v959
                %v961 = vld [vmem:[%s895 + $0x100] sm:%s885]
                %962 = vst [vmem:[%s896 + $0x100] sm:%s885] %v961
                %v963 = vld [vmem:[%s895 + $0x108] sm:%s885]
                %964 = vst [vmem:[%s896 + $0x108] sm:%s885] %v963
                %v965 = vld [vmem:[%s895 + $0x110] sm:%s885]
                %966 = vst [vmem:[%s896 + $0x110] sm:%s885] %v965
                %v967 = vld [vmem:[%s895 + $0x118] sm:%s885]
                %968 = vst [vmem:[%s896 + $0x118] sm:%s885] %v967
                %v969 = vld [vmem:[%s895 + $0x120] sm:%s885]
                %970 = vst [vmem:[%s896 + $0x120] sm:%s885] %v969
                %v971 = vld [vmem:[%s895 + $0x128] sm:%s885]
                %972 = vst [vmem:[%s896 + $0x128] sm:%s885] %v971
                %v973 = vld [vmem:[%s895 + $0x130] sm:%s885]
                %974 = vst [vmem:[%s896 + $0x130] sm:%s885] %v973
                %v975 = vld [vmem:[%s895 + $0x138] sm:%s885]
                %976 = vst [vmem:[%s896 + $0x138] sm:%s885] %v975
                %v977 = vld [vmem:[%s895 + $0x140] sm:%s885]
                %978 = vst [vmem:[%s896 + $0x140] sm:%s885] %v977
                %v979 = vld [vmem:[%s895 + $0x148] sm:%s885]
                %980 = vst [vmem:[%s896 + $0x148] sm:%s885] %v979
                %v981 = vld [vmem:[%s895 + $0x150] sm:%s885]
                %982 = vst [vmem:[%s896 + $0x150] sm:%s885] %v981
                %v983 = vld [vmem:[%s895 + $0x158] sm:%s885]
                %984 = vst [vmem:[%s896 + $0x158] sm:%s885] %v983
                %v985 = vld [vmem:[%s895 + $0x160] sm:%s885]
                %986 = vst [vmem:[%s896 + $0x160] sm:%s885] %v985
                %v987 = vld [vmem:[%s895 + $0x168] sm:%s885]
                %988 = vst [vmem:[%s896 + $0x168] sm:%s885] %v987
                %v989 = vld [vmem:[%s895 + $0x170] sm:%s885]
                %990 = vst [vmem:[%s896 + $0x170] sm:%s885] %v989
                %v991 = vld [vmem:[%s895 + $0x178] sm:%s885]
                %992 = vst [vmem:[%s896 + $0x178] sm:%s885] %v991
                %v993 = vld [vmem:[%s895 + $0x180] sm:%s885]
                %994 = vst [vmem:[%s896 + $0x180] sm:%s885] %v993
                %v995 = vld [vmem:[%s895 + $0x188] sm:%s885]
                %996 = vst [vmem:[%s896 + $0x188] sm:%s885] %v995
                %v997 = vld [vmem:[%s895 + $0x190] sm:%s885]
                %998 = vst [vmem:[%s896 + $0x190] sm:%s885] %v997
                %v999 = vld [vmem:[%s895 + $0x198] sm:%s885]
                %1000 = vst [vmem:[%s896 + $0x198] sm:%s885] %v999
                %v1001 = vld [vmem:[%s895 + $0x1a0] sm:%s885]
                %1002 = vst [vmem:[%s896 + $0x1a0] sm:%s885] %v1001
                %v1003 = vld [vmem:[%s895 + $0x1a8] sm:%s885]
                %1004 = vst [vmem:[%s896 + $0x1a8] sm:%s885] %v1003
                %v1005 = vld [vmem:[%s895 + $0x1b0] sm:%s885]
                %1006 = vst [vmem:[%s896 + $0x1b0] sm:%s885] %v1005
                %v1007 = vld [vmem:[%s895 + $0x1b8] sm:%s885]
                %1008 = vst [vmem:[%s896 + $0x1b8] sm:%s885] %v1007
                %v1009 = vld [vmem:[%s895 + $0x1c0] sm:%s885]
                %1010 = vst [vmem:[%s896 + $0x1c0] sm:%s885] %v1009
                %v1011 = vld [vmem:[%s895 + $0x1c8] sm:%s885]
                %1012 = vst [vmem:[%s896 + $0x1c8] sm:%s885] %v1011
                %v1013 = vld [vmem:[%s895 + $0x1d0] sm:%s885]
                %1014 = vst [vmem:[%s896 + $0x1d0] sm:%s885] %v1013
                %v1015 = vld [vmem:[%s895 + $0x1d8] sm:%s885]
                %1016 = vst [vmem:[%s896 + $0x1d8] sm:%s885] %v1015
                %v1017 = vld [vmem:[%s895 + $0x1e0] sm:%s885]
                %1018 = vst [vmem:[%s896 + $0x1e0] sm:%s885] %v1017
                %v1019 = vld [vmem:[%s895 + $0x1e8] sm:%s885]
                %1020 = vst [vmem:[%s896 + $0x1e8] sm:%s885] %v1019
                %v1021 = vld [vmem:[%s895 + $0x1f0] sm:%s885]
                %1022 = vst [vmem:[%s896 + $0x1f0] sm:%s885] %v1021
                %s1023 = sadd.s32 1, %s894
                %p1024 = scmp.ge.s32.totalorder %s1023, %s886
                %s1025 = scalar_select %p1024, 0, %s1023
                %s1026 = smul.u32 %s1025, 504
                %s1027 = smul.u32 %s1025, 504
                %s1028 = scalar_lea.vmem %s865, %s1026 [#allocation6]
                %s1029 = scalar_lea.vmem %s876, %s1027
              $region57: #{tpu_custom_call.1} parent=51 // loop_footer
                %s891 = sadd.s32 %s889, 1
              $region58: #{tpu_custom_call.1} parent=51 // loop_footer_branch
                %888 = sbr.rel target = $region54
              $region59: #{tpu_custom_call.1} parent=51 // loop_exit
                _
              %s1030 = sdiv.u32.pop %s872, 63
              %s1031 = srem.u32.pop %s872, 63
              %s1032 = smul.u32 %s1030, 63
              %s1033 = smul.u32 8, %s1032
              %s1034 = scalar_lea.vmem %s865, %s1033 [#allocation6]
              %s1035 = smul.u32 8, %s1032
              %s1036 = scalar_lea.vmem %s876, %s1035
              // While loop
              $region60: #{tpu_custom_call.1} parent=51 // loop_pre_header
                _
              $region61: #{tpu_custom_call.1} parent=51 // loop_header
                %s1038 = sphi 0, %s1040
                %p1039 = scmp.ge.s32.totalorder %s1038, %s1031
                %s1043 = sphi 0, %s1050
                %s1044 = sphi %s1034, %s1053
                %s1045 = sphi %s1036, %s1054
              $region62: #{tpu_custom_call.1} parent=51 // loop_header_branch
                %1042 = sbr.rel (%p1039) target = $region66
              $region63: #{tpu_custom_call.1} parent=51 // loop_body
                %v1046 = vld [vmem:[%s1044] sm:%s885]
                %1047 = vst [vmem:[%s1045] sm:%s885] %v1046
                %s1048 = sadd.s32 1, %s1043
                %p1049 = scmp.ge.s32.totalorder %s1048, %s1031
                %s1050 = scalar_select %p1049, 0, %s1048
                %s1051 = smul.u32 %s1050, 8
                %s1052 = smul.u32 %s1050, 8
                %s1053 = scalar_lea.vmem %s1034, %s1051 [#allocation6]
                %s1054 = scalar_lea.vmem %s1036, %s1052
              $region64: #{tpu_custom_call.1} parent=51 // loop_footer
                %s1040 = sadd.s32 %s1038, 1
              $region65: #{tpu_custom_call.1} parent=51 // loop_footer_branch
                %1037 = sbr.rel target = $region61
              $region66: #{tpu_custom_call.1} parent=51 // loop_exit
                _
            $region52: #{tpu_custom_call.1} parent=43 // pred_fallthru
              _
          $region44: #{tpu_custom_call.1} parent=39 // pred_fallthru
            _
          %1228 = vnop
        $region40: #{tpu_custom_call.1} parent=27 // pred_fallthru
          _
      $region28: #{tpu_custom_call.1} parent=5 // pred_fallthru
        _
      %p1229 = scmp.le.s32.totalorder 2, %s14
      // Predicated region
      $region89: #{tpu_custom_call.1} parent=5 // pred_check
        %p1230 = pneg %p1229
      $region90: #{tpu_custom_call.1} parent=5 // pred_check_branch
        %1232 = sbr.rel (%p1230) target = $region92
      $region91: #{tpu_custom_call.1} parent=5 // pred_region
        %s1233 = ssub.s32 %s14, 2
        // Predicated region
        $region93: #{tpu_custom_call.1} parent=91 // pred_check
          %p1234 = pneg %p95
        $region94: #{tpu_custom_call.1} parent=91 // pred_check_branch
          %1236 = sbr.rel (%p1234) target = $region96
        $region95: #{tpu_custom_call.1} parent=91 // pred_region
          %s1237 = sand.u32 %s80, 1
          %s1238 = sand.u32 %s80, 1
          %s1239 = smul.addr %s1238, 504
          %s1240 = scalar_lea.vmem [#allocation6], %s1239
        $region96: #{tpu_custom_call.1} parent=91 // pred_fallthru
          _
      $region92: #{tpu_custom_call.1} parent=5 // pred_fallthru
        _
    $region6: #{tpu_custom_call.1} parent=1 // loop_footer
      %s18 = sadd.s32 1, %s14
    $region7: #{tpu_custom_call.1} parent=1 // loop_footer_branch
      %13 = sbr.rel target = $region3
    $region8: #{tpu_custom_call.1} parent=1 // loop_exit
      _
    %1241 = vsyncpa [#allocation3], 1
    %s1242 = scalar_lea.sflag [#allocation3], 1
    %1243 = vsyncpa %s1242, 1
    %1244 = vsyncpa [#allocation5], 1
    %s1245 = scalar_lea.sflag [#allocation5], 1
    %1246 = vsyncpa %s1245, 1

</llo_original>
